<compile_context>
chip_gen: v7x
topology: tpu7x:2x2x1
jax: 0.10.0
libtpu: 0.0.40
codegen_flags: <defaults>
</compile_context>

<pallas_src>
import functools

import jax
import jax.numpy as jnp
import numpy as np
from jax import lax
from jax.experimental import pallas as pl
from jax.experimental.pallas import tpu as pltpu

LANE = 128


def _round_up(x, m):
    return (x + m - 1) // m * m


def _vmem_budget_bytes():
    """Scoped-VMEM budget: ~3/4 of physical VMEM; fallback is safe on v7x (64 MiB)."""
    try:
        cap = int(pltpu.get_tpu_info().vmem_capacity_bytes)
        return min(cap * 3 // 4, 100 * 1024 * 1024)
    except Exception:
        return 48 * 1024 * 1024


def textcnn_kernel(x_ref, w_ref, b_ref, fcw_ref, fcb_ref, out_ref, *,
                   k_max, seq_len, kernel_sizes, kernel_num):
    """One grid step = one block of TB batch rows (seq-major layout).

    x_ref:   (L + k_max - 1, TB, E)  embedded tokens, seq zero-padded by k_max-1 rows
    w_ref:   (k_max, E, C_pad)       fused conv weights: one (E, C_pad) slab per tap
    b_ref:   (1, C_pad)              fused conv bias
    fcw_ref: (C_pad, N_pad)          fc weight (padded)
    fcb_ref: (1, N_pad)              fc bias (padded)
    out_ref: (TB, N_pad)             logits (padded; lane-dense store)
    """
    L_pad, TB, E = x_ref.shape
    L = seq_len
    C_pad = w_ref.shape[2]
    C = kernel_num

    x = x_ref[...]

    # Per-tap accumulation (no im2col): conv[l, b, :] = sum_j x[l+j, b, :] @ w[j].
    # Tap slices are leading-(major-)axis offsets and the (L*TB, E) reshape only
    # collapses leading dims (TB is a multiple of 8) -> no data movement.
    acc = jnp.dot(x[0:L].reshape(L * TB, E), w_ref[0],
                  preferred_element_type=jnp.float32)
    for j in range(1, k_max):
        acc = acc + jnp.dot(x[j:j + L].reshape(L * TB, E), w_ref[j],
                            preferred_element_type=jnp.float32)

    conv = jnp.maximum(acc + b_ref[...], 0.0).reshape(L, TB, C_pad)

    # Validity mask built in-kernel from static (kernel_sizes, L): a branch with
    # kernel k only covers output positions [0, L-k]; zero-padded channels are never
    # valid.  Zeroing (not -inf) is safe because ReLU >= 0 and every real channel has
    # >= 1 valid position (L >= max kernel size); it also keeps padded channels at
    # exactly 0 so the zero-padded fc rows stay harmless.
    pos = lax.broadcasted_iota(jnp.int32, (L, C_pad), 0)
    chan = lax.broadcasted_iota(jnp.int32, (L, C_pad), 1)
    valid = jnp.zeros((L, C_pad), jnp.bool_)
    for idx, k in enumerate(kernel_sizes):
        valid = valid | ((chan >= idx * C) & (chan < (idx + 1) * C) & (pos <= L - k))
    conv = jnp.where(valid[:, None, :], conv, 0.0)

    # Max-over-time: leading-axis reduction -> elementwise maxes over (TB, C_pad).
    feat = jnp.max(conv, axis=0)

    # TODO(synk): dropout is identity (inference mode); training-mode dropout not implemented.
    logits = jnp.dot(feat.astype(fcw_ref.dtype), fcw_ref[...],
                     preferred_element_type=jnp.float32)
    out_ref[...] = logits + fcb_ref[...]


def _fused_params(params, kernel_sizes, kernel_num, num_classes, compute_dtype):
    """Fuse per-branch conv weights into one (k_max, E, C_pad) per-tap weight stack."""
    n = len(kernel_sizes)
    k_max = max(kernel_sizes)
    C = kernel_num
    E = params["embedding"].shape[1]
    # NOTE: when n*C >= 128, rounding C_pad to 256 fills the 256-wide MXU on v6e/v7x
    # better; 128 kept here (toy channel counts, and exact fit for v5e's 128-wide MXU).
    C_pad = _round_up(n * C, LANE)
    N_pad = _round_up(num_classes, LANE)

    w_taps, b_cols = [], []
    for idx, k in enumerate(kernel_sizes):
        w = params[f"conv{idx}_w"]                                   # (k, E, C)
        w_taps.append(jnp.pad(w, ((0, k_max - k), (0, 0), (0, 0))))  # zero-pad taps
        b_cols.append(params[f"conv{idx}_b"])                        # (1, C)
    w_fused = jnp.concatenate(w_taps, axis=2)                        # (k_max, E, n*C)
    w_fused = jnp.pad(w_fused, ((0, 0), (0, 0), (0, C_pad - n * C)))
    b_fused = jnp.pad(jnp.concatenate(b_cols, axis=1), ((0, 0), (0, C_pad - n * C)))

    fc_w = jnp.pad(params["fc_w"], ((0, C_pad - n * C), (0, N_pad - num_classes)))
    fc_b = jnp.pad(params["fc_b"], ((0, 0), (0, N_pad - num_classes)))

    return (w_fused.astype(compute_dtype), b_fused.astype(jnp.float32),
            fc_w.astype(compute_dtype), fc_b.astype(jnp.float32),
            C_pad, N_pad, k_max, E)


def _choose_tb(B, block_b, L, L_pad, E, C_pad, N_pad, k_max, itemsize, budget):
    """Batch rows per grid step: multiple of 8, >=2 grid steps when possible, fits VMEM."""
    TB = max(8, _round_up(min(block_b, max(B, 1)), 8))
    # >= 2 grid steps whenever the batch allows it: lets the 'parallel' batch axis
    # shard across TensorCores on multi-TC chips (v7x) and overlaps DMA with compute.
    half = (_round_up(B, 8) // 2) // 8 * 8
    if half >= 8:
        TB = min(TB, half)

    const_bytes = (2 * (k_max * E * C_pad + C_pad * N_pad) * itemsize
                   + 2 * (C_pad + N_pad) * 4)

    def step_bytes(tb):
        x_bytes = 2 * L_pad * tb * E * itemsize      # double-buffered activation block
        conv_bytes = 2 * L * tb * C_pad * 4          # f32 conv intermediate (+headroom)
        out_bytes = 2 * tb * N_pad * 4
        return x_bytes + conv_bytes + out_bytes + const_bytes

    while TB > 8 and step_bytes(TB) > budget:
        TB -= 8
    return TB


def textcnn_forward(tokens, params, kernel_sizes, kernel_num, num_classes,
                    *, block_b=256, compute_dtype=jnp.bfloat16):
    B, L = tokens.shape
    assert L >= max(kernel_sizes)

    (w_fused, b_fused, fc_w, fc_b, C_pad, N_pad, k_max, E) = _fused_params(
        params, kernel_sizes, kernel_num, num_classes, compute_dtype)

    # Seq-major activation (L, B, E): tap slices become major-axis offsets and the
    # max-over-time becomes a leading-axis reduction in the kernel.  E is NOT padded
    # (per-tap matmuls contract K=E directly) -> ~4x less HBM/DMA traffic at E=32.
    # TODO(synk): for large vocab/E/B, gather embedding rows in-kernel (scalar-
    # prefetched token ids + manual DMA from an HBM-resident table); at E=32 the
    # per-row DMAs (~128 B) would be descriptor-bound, so the wrapper gather stays.
    emb = jnp.take(params["embedding"].astype(compute_dtype), tokens.T, axis=0)  # (L, B, E)

    L_pad = L + k_max - 1
    budget = _vmem_budget_bytes()
    TB = _choose_tb(B, block_b, L, L_pad, E, C_pad, N_pad, k_max,
                    jnp.dtype(compute_dtype).itemsize, budget)
    B_pad = _round_up(B, TB)
    # Seq zero-pad by k_max-1 rows so every tap slice is in-bounds (invalid tail
    # positions are masked in-kernel); batch pad rows are garbage, sliced off below.
    emb = jnp.pad(emb, ((0, k_max - 1), (0, B_pad - B), (0, 0)))

    out = pl.pallas_call(
        functools.partial(textcnn_kernel, k_max=k_max, seq_len=L,
                          kernel_sizes=tuple(kernel_sizes), kernel_num=kernel_num),
        out_shape=jax.ShapeDtypeStruct((B_pad, N_pad), jnp.float32),
        grid=(B_pad // TB,),
        in_specs=[
            pl.BlockSpec((L_pad, TB, E), lambda b: (0, b, 0)),
            # Grid-invariant operands: constant index_map -> DMA'd once, kept resident.
            pl.BlockSpec(w_fused.shape, lambda b: (0, 0, 0)),
            pl.BlockSpec(b_fused.shape, lambda b: (0, 0)),
            pl.BlockSpec(fc_w.shape, lambda b: (0, 0)),
            pl.BlockSpec(fc_b.shape, lambda b: (0, 0)),
        ],
        out_specs=pl.BlockSpec((TB, N_pad), lambda b: (b, 0)),
        compiler_params=pltpu.CompilerParams(
            dimension_semantics=("parallel",),
            vmem_limit_bytes=budget,
        ),
    )(emb, w_fused, b_fused, fc_w, fc_b)

    return out[:B, :num_classes]


def textcnn_reference(tokens, params, kernel_sizes, kernel_num):
    """Pure-JAX f32 reference mirroring the PyTorch forward (eval mode)."""
    emb = jnp.take(params["embedding"], tokens, axis=0)   # (B, L, E)
    B, L, E = emb.shape
    feats = []
    for idx, k in enumerate(kernel_sizes):
        w = params[f"conv{idx}_w"]    # (k, E, C)
        bb = params[f"conv{idx}_b"]   # (1, C)
        Lout = L - k + 1
        conv = jnp.zeros((B, Lout, kernel_num), jnp.float32)
        for j in range(k):
            conv = conv + jnp.einsum("ble,ec->blc", emb[:, j:j + Lout, :], w[j])
        conv = jax.nn.relu(conv + bb[None, :, :])
        feats.append(jnp.max(conv, axis=1))               # (B, C)
    feat = jnp.concatenate(feats, axis=1)                 # (B, C * n)
    return feat @ params["fc_w"] + params["fc_b"]         # (B, num_classes)


def init_params(key, vocab_size, embed_size, kernel_num, kernel_sizes, num_classes):
    n = len(kernel_sizes)
    keys = jax.random.split(key, 3 + 2 * n)
    params = {
        "embedding": 0.1 * jax.random.normal(
            keys[0], (vocab_size, embed_size), jnp.float32),
        "fc_w": 0.1 * jax.random.normal(
            keys[1], (kernel_num * n, num_classes), jnp.float32),
        "fc_b": 0.1 * jax.random.normal(keys[2], (1, num_classes), jnp.float32),
    }
    for idx, k in enumerate(kernel_sizes):
        params[f"conv{idx}_w"] = 0.1 * jax.random.normal(
            keys[3 + 2 * idx], (k, embed_size, kernel_num), jnp.float32)
        params[f"conv{idx}_b"] = 0.1 * jax.random.normal(
            keys[4 + 2 * idx], (1, kernel_num), jnp.float32)
    return params


if __name__ == "__main__":
    # Small config consistent with the module's __init__.
    vocab_size = 50
    embed_size = 32
    kernel_num = 8
    kernel_sizes = (2, 3, 4)
    num_classes = 4
    batch, seq_len = 16, 16

    key = jax.random.PRNGKey(0)
    k_tok, k_param = jax.random.split(key)
    tokens = jax.random.randint(k_tok, (batch, seq_len), 0, vocab_size, dtype=jnp.int32)
    params = init_params(k_param, vocab_size, embed_size, kernel_num,
                         kernel_sizes, num_classes)

    ref = textcnn_reference(tokens, params, kernel_sizes, kernel_num)

    # f32-matmul path, multi-step batched grid (grid=(2,)): strict check.
    logits_f32 = textcnn_forward(tokens, params, kernel_sizes, kernel_num, num_classes,
                                 block_b=8, compute_dtype=jnp.float32)
    logits_f32 = jax.block_until_ready(logits_f32)
    np.testing.assert_allclose(np.asarray(logits_f32), np.asarray(ref),
                               rtol=1e-4, atol=1e-5)

    # bf16-matmul path (perf-preferred on v6e/v7x): loose check.
    logits_bf16 = textcnn_forward(tokens, params, kernel_sizes, kernel_num, num_classes,
                                  compute_dtype=jnp.bfloat16)
    logits_bf16 = jax.block_until_ready(logits_bf16)
    np.testing.assert_allclose(np.asarray(logits_bf16), np.asarray(ref),
                               rtol=5e-2, atol=1e-2)

    print("KERNEL_OK")
</pallas_src>

<mosaic_0001>
module attributes {stable_mosaic.version = 11 : i64} {
  func.func @textcnn_kernel(%arg0: i32, %arg1: memref<19x8x32xf32, #tpu.memory_space<vmem>>, %arg2: memref<4x32x128xf32, #tpu.memory_space<vmem>>, %arg3: memref<1x128xf32, #tpu.memory_space<vmem>>, %arg4: memref<128x128xf32, #tpu.memory_space<vmem>>, %arg5: memref<1x128xf32, #tpu.memory_space<vmem>>, %arg6: memref<8x128xf32, #tpu.memory_space<vmem>>) attributes {dimension_semantics = [#tpu.dimension_semantics<parallel>], iteration_bounds = array<i64: 2>, scalar_prefetch = 0 : i64, scratch_operands = 0 : i64, tpu.core_type = #tpu.core_type<tc>, window_params = [{transform_indices = @transform_0, window_bounds = array<i64: 19, 8, 32>}, {pipeline_mode = #tpu.pipeline_mode<synchronous>, transform_indices = @transform_1, window_bounds = array<i64: 4, 32, 128>}, {pipeline_mode = #tpu.pipeline_mode<synchronous>, transform_indices = @transform_2, window_bounds = array<i64: 1, 128>}, {pipeline_mode = #tpu.pipeline_mode<synchronous>, transform_indices = @transform_3, window_bounds = array<i64: 128, 128>}, {pipeline_mode = #tpu.pipeline_mode<synchronous>, transform_indices = @transform_4, window_bounds = array<i64: 1, 128>}, {transform_indices = @transform_5, window_bounds = array<i64: 8, 128>}]} {
    %c0 = arith.constant 0 : index
    %c0_0 = arith.constant 0 : index
    %c0_1 = arith.constant 0 : index
    %0 = vector.load %arg1[%c0, %c0_0, %c0_1] : memref<19x8x32xf32, #tpu.memory_space<vmem>>, vector<19x8x32xf32>
    %1 = vector.extract_strided_slice %0 {offsets = [0, 0, 0], sizes = [16, 8, 32], strides = [1, 1, 1]} : vector<19x8x32xf32> to vector<16x8x32xf32>
    %2 = vector.shape_cast %1 : vector<16x8x32xf32> to vector<128x32xf32>
    %c0_2 = arith.constant 0 : index
    %c0_3 = arith.constant 0 : index
    %c0_4 = arith.constant 0 : index
    %3 = vector.load %arg2[%c0_2, %c0_3, %c0_4] : memref<4x32x128xf32, #tpu.memory_space<vmem>>, vector<1x32x128xf32>
    %4 = vector.shape_cast %3 : vector<1x32x128xf32> to vector<32x128xf32>
    %cst = arith.constant dense<0.000000e+00> : vector<128x128xf32>
    %5 = tpu.matmul %2, %4, %cst {dimension_numbers = #tpu.dot_dimension_numbers<[1], [0], [0], [1], [0, 0, 1, 1], [], []>} : vector<128x32xf32>, vector<32x128xf32>, vector<128x128xf32> -> vector<128x128xf32>
    %6 = vector.extract_strided_slice %0 {offsets = [1, 0, 0], sizes = [16, 8, 32], strides = [1, 1, 1]} : vector<19x8x32xf32> to vector<16x8x32xf32>
    %7 = vector.shape_cast %6 : vector<16x8x32xf32> to vector<128x32xf32>
    %c1 = arith.constant 1 : index
    %c0_5 = arith.constant 0 : index
    %c0_6 = arith.constant 0 : index
    %8 = vector.load %arg2[%c1, %c0_5, %c0_6] : memref<4x32x128xf32, #tpu.memory_space<vmem>>, vector<1x32x128xf32>
    %9 = vector.shape_cast %8 : vector<1x32x128xf32> to vector<32x128xf32>
    %cst_7 = arith.constant dense<0.000000e+00> : vector<128x128xf32>
    %10 = tpu.matmul %7, %9, %cst_7 {dimension_numbers = #tpu.dot_dimension_numbers<[1], [0], [0], [1], [0, 0, 1, 1], [], []>} : vector<128x32xf32>, vector<32x128xf32>, vector<128x128xf32> -> vector<128x128xf32>
    %11 = arith.addf %5, %10 : vector<128x128xf32>
    %12 = vector.extract_strided_slice %0 {offsets = [2, 0, 0], sizes = [16, 8, 32], strides = [1, 1, 1]} : vector<19x8x32xf32> to vector<16x8x32xf32>
    %13 = vector.shape_cast %12 : vector<16x8x32xf32> to vector<128x32xf32>
    %c2 = arith.constant 2 : index
    %c0_8 = arith.constant 0 : index
    %c0_9 = arith.constant 0 : index
    %14 = vector.load %arg2[%c2, %c0_8, %c0_9] : memref<4x32x128xf32, #tpu.memory_space<vmem>>, vector<1x32x128xf32>
    %15 = vector.shape_cast %14 : vector<1x32x128xf32> to vector<32x128xf32>
    %cst_10 = arith.constant dense<0.000000e+00> : vector<128x128xf32>
    %16 = tpu.matmul %13, %15, %cst_10 {dimension_numbers = #tpu.dot_dimension_numbers<[1], [0], [0], [1], [0, 0, 1, 1], [], []>} : vector<128x32xf32>, vector<32x128xf32>, vector<128x128xf32> -> vector<128x128xf32>
    %17 = arith.addf %11, %16 : vector<128x128xf32>
    %18 = vector.extract_strided_slice %0 {offsets = [3, 0, 0], sizes = [16, 8, 32], strides = [1, 1, 1]} : vector<19x8x32xf32> to vector<16x8x32xf32>
    %19 = vector.shape_cast %18 : vector<16x8x32xf32> to vector<128x32xf32>
    %c3 = arith.constant 3 : index
    %c0_11 = arith.constant 0 : index
    %c0_12 = arith.constant 0 : index
    %20 = vector.load %arg2[%c3, %c0_11, %c0_12] : memref<4x32x128xf32, #tpu.memory_space<vmem>>, vector<1x32x128xf32>
    %21 = vector.shape_cast %20 : vector<1x32x128xf32> to vector<32x128xf32>
    %cst_13 = arith.constant dense<0.000000e+00> : vector<128x128xf32>
    %22 = tpu.matmul %19, %21, %cst_13 {dimension_numbers = #tpu.dot_dimension_numbers<[1], [0], [0], [1], [0, 0, 1, 1], [], []>} : vector<128x32xf32>, vector<32x128xf32>, vector<128x128xf32> -> vector<128x128xf32>
    %23 = arith.addf %17, %22 : vector<128x128xf32>
    %c0_14 = arith.constant 0 : index
    %c0_15 = arith.constant 0 : index
    %24 = vector.load %arg3[%c0_14, %c0_15] : memref<1x128xf32, #tpu.memory_space<vmem>>, vector<1x128xf32>
    %25 = vector.broadcast %24 : vector<1x128xf32> to vector<128x128xf32>
    %26 = arith.addf %23, %25 : vector<128x128xf32>
    %cst_16 = arith.constant 0.000000e+00 : f32
    %27 = vector.broadcast %cst_16 : f32 to vector<128x128xf32>
    %28 = arith.maximumf %26, %27 : vector<128x128xf32>
    %29 = vector.shape_cast %28 : vector<128x128xf32> to vector<16x8x128xf32>
    %30 = tpu.iota {dimensions = array<i32: 0>} : vector<16x128xi32>
    %31 = tpu.iota {dimensions = array<i32: 1>} : vector<16x128xi32>
    %false = arith.constant false
    %32 = vector.broadcast %false : i1 to vector<16x128xi1>
    %c0_i32 = arith.constant 0 : i32
    %33 = vector.broadcast %c0_i32 : i32 to vector<16x128xi32>
    %34 = arith.cmpi sge, %31, %33 : vector<16x128xi32>
    %c8_i32 = arith.constant 8 : i32
    %35 = vector.broadcast %c8_i32 : i32 to vector<16x128xi32>
    %36 = arith.cmpi slt, %31, %35 : vector<16x128xi32>
    %37 = arith.andi %34, %36 : vector<16x128xi1>
    %c14_i32 = arith.constant 14 : i32
    %38 = vector.broadcast %c14_i32 : i32 to vector<16x128xi32>
    %39 = arith.cmpi sle, %30, %38 : vector<16x128xi32>
    %40 = arith.andi %37, %39 : vector<16x128xi1>
    %41 = arith.ori %32, %40 : vector<16x128xi1>
    %c8_i32_17 = arith.constant 8 : i32
    %42 = vector.broadcast %c8_i32_17 : i32 to vector<16x128xi32>
    %43 = arith.cmpi sge, %31, %42 : vector<16x128xi32>
    %c16_i32 = arith.constant 16 : i32
    %44 = vector.broadcast %c16_i32 : i32 to vector<16x128xi32>
    %45 = arith.cmpi slt, %31, %44 : vector<16x128xi32>
    %46 = arith.andi %43, %45 : vector<16x128xi1>
    %c13_i32 = arith.constant 13 : i32
    %47 = vector.broadcast %c13_i32 : i32 to vector<16x128xi32>
    %48 = arith.cmpi sle, %30, %47 : vector<16x128xi32>
    %49 = arith.andi %46, %48 : vector<16x128xi1>
    %50 = arith.ori %41, %49 : vector<16x128xi1>
    %c16_i32_18 = arith.constant 16 : i32
    %51 = vector.broadcast %c16_i32_18 : i32 to vector<16x128xi32>
    %52 = arith.cmpi sge, %31, %51 : vector<16x128xi32>
    %c24_i32 = arith.constant 24 : i32
    %53 = vector.broadcast %c24_i32 : i32 to vector<16x128xi32>
    %54 = arith.cmpi slt, %31, %53 : vector<16x128xi32>
    %55 = arith.andi %52, %54 : vector<16x128xi1>
    %c12_i32 = arith.constant 12 : i32
    %56 = vector.broadcast %c12_i32 : i32 to vector<16x128xi32>
    %57 = arith.cmpi sle, %30, %56 : vector<16x128xi32>
    %58 = arith.andi %55, %57 : vector<16x128xi1>
    %59 = arith.ori %50, %58 : vector<16x128xi1>
    %60 = vector.shape_cast %59 : vector<16x128xi1> to vector<16x1x128xi1>
    %cst_19 = arith.constant 0.000000e+00 : f32
    %61 = vector.shape_cast %60 : vector<16x1x128xi1> to vector<16x1x128xi1>
    %62 = vector.broadcast %61 : vector<16x1x128xi1> to vector<16x8x128xi1>
    %63 = vector.broadcast %cst_19 : f32 to vector<16x8x128xf32>
    %64 = arith.select %62, %29, %63 : vector<16x8x128xi1>, vector<16x8x128xf32>
    %cst_20 = arith.constant dense<0xFF800000> : vector<8x128xf32>
    %65 = vector.multi_reduction <maximumf>, %64, %cst_20 [0] : vector<16x8x128xf32> to vector<8x128xf32>
    %c0_21 = arith.constant 0 : index
    %c0_22 = arith.constant 0 : index
    %66 = vector.load %arg4[%c0_21, %c0_22] : memref<128x128xf32, #tpu.memory_space<vmem>>, vector<128x128xf32>
    %cst_23 = arith.constant dense<0.000000e+00> : vector<8x128xf32>
    %67 = tpu.matmul %65, %66, %cst_23 {dimension_numbers = #tpu.dot_dimension_numbers<[1], [0], [0], [1], [0, 0, 1, 1], [], []>} : vector<8x128xf32>, vector<128x128xf32>, vector<8x128xf32> -> vector<8x128xf32>
    %c0_24 = arith.constant 0 : index
    %c0_25 = arith.constant 0 : index
    %68 = vector.load %arg5[%c0_24, %c0_25] : memref<1x128xf32, #tpu.memory_space<vmem>>, vector<1x128xf32>
    %69 = vector.broadcast %68 : vector<1x128xf32> to vector<8x128xf32>
    %70 = arith.addf %67, %69 : vector<8x128xf32>
    %c0_26 = arith.constant 0 : index
    %c0_27 = arith.constant 0 : index
    %71 = vector.load %arg6[%c0_26, %c0_27] : memref<8x128xf32, #tpu.memory_space<vmem>>, vector<8x128xf32>
    tpu.vector_store %arg6[%c0_26, %c0_27], %70 {strides = array<i32>} : memref<8x128xf32, #tpu.memory_space<vmem>>, vector<8x128xf32>,
    return
  }
  func.func @transform_0(%arg0: i32) -> (i32, i32, i32) {
    %c0_i32 = arith.constant 0 : i32
    %c0_i32_0 = arith.constant 0 : i32
    %c0_i32_1 = arith.constant 0 : i32
    return %c0_i32, %arg0, %c0_i32_0 : i32, i32, i32
  }
  func.func @transform_1(%arg0: i32) -> (i32, i32, i32) {
    %c0_i32 = arith.constant 0 : i32
    %c0_i32_0 = arith.constant 0 : i32
    %c0_i32_1 = arith.constant 0 : i32
    %c0_i32_2 = arith.constant 0 : i32
    return %c0_i32, %c0_i32_0, %c0_i32_1 : i32, i32, i32
  }
  func.func @transform_2(%arg0: i32) -> (i32, i32) {
    %c0_i32 = arith.constant 0 : i32
    %c0_i32_0 = arith.constant 0 : i32
    %c0_i32_1 = arith.constant 0 : i32
    return %c0_i32, %c0_i32_0 : i32, i32
  }
  func.func @transform_3(%arg0: i32) -> (i32, i32) {
    %c0_i32 = arith.constant 0 : i32
    %c0_i32_0 = arith.constant 0 : i32
    %c0_i32_1 = arith.constant 0 : i32
    return %c0_i32, %c0_i32_0 : i32, i32
  }
  func.func @transform_4(%arg0: i32) -> (i32, i32) {
    %c0_i32 = arith.constant 0 : i32
    %c0_i32_0 = arith.constant 0 : i32
    %c0_i32_1 = arith.constant 0 : i32
    return %c0_i32, %c0_i32_0 : i32, i32
  }
  func.func @transform_5(%arg0: i32) -> (i32, i32) {
    %c0_i32 = arith.constant 0 : i32
    %c0_i32_0 = arith.constant 0 : i32
    return %arg0, %c0_i32 : i32, i32
  }
}

</mosaic_0001>

<llo_original>
// kernel: tpu_custom_call.1
$region0: #{tpu_custom_call.1}
  #allocation0 [shape = 'u32[]', space=smem, size = 0x4, offset = 0x4, fixed_abs, tag = 'smem constant byte address 0x4 - core index']
  #allocation1 [shape = 'u32[144,128]{1,0:T(1,128)}', space=vmem, size = 0x12000, scoped, tag = 'internal scratch']
  %s0 = inlined_call_operand.hbm [shape: f32[19,16,32], index: 0, kind: input, shape index: {}]
  %s1 = inlined_call_operand.hbm [shape: f32[4,32,128], index: 1, kind: input, shape index: {}]
  %s2 = inlined_call_operand.vmem [shape: f32[1,128], index: 2, kind: input, shape index: {}]
  %s3 = inlined_call_operand.hbm [shape: f32[128,128], index: 3, kind: input, shape index: {}]
  %s4 = inlined_call_operand.vmem [shape: f32[1,128], index: 4, kind: input, shape index: {}]
  %s5 = inlined_call_operand.hbm [shape: f32[16,128], index: 5, kind: output, shape index: {}]
  %s6 = sld [smem:[#allocation0]]
  $region65: #{tpu_custom_call.1} parent=0
    _
  %s8 = ssub.s32 1, %s6
  %s9 = scalar_select 0, %s8, %s6
  $region1: #{tpu_custom_call.1} parent=0
    #allocation2 [shape = 'u8[155648]{0}', space=vmem, size = 0x26000, scoped, tag = 'input window, operand 0']
    #allocation3 [shape = 's32[2]{0}', space=sflag, size = 0x8, scoped, tag = 'scoped memory for tpu_custom_call.1']
    #allocation4 [shape = 's32[2]{0}', space=sflag, size = 0x8, scoped, tag = 'scoped memory for tpu_custom_call.1']
    #allocation5 [shape = 'u8[65536]{0}', space=vmem, size = 0x10000, scoped, tag = 'input window, operand 1, single buffered']
    #allocation6 [shape = 's32[1]{0}', space=sflag, size = 0x4, scoped, tag = 'scoped memory for tpu_custom_call.1']
    #allocation7 [shape = 'u8[65536]{0}', space=vmem, size = 0x10000, scoped, tag = 'input window, operand 3, single buffered']
    #allocation8 [shape = 'u8[8192]{0}', space=vmem, size = 0x2000, scoped, tag = 'output window, operand 0']
    %10 = vsyncpa [#allocation3], 0
    %s11 = scalar_lea.sflag [#allocation3], 1
    %12 = vsyncpa %s11, 0
    %13 = vsyncpa [#allocation6], 0
    %14 = vsyncpa [#allocation4], 0
    %s15 = scalar_lea.sflag [#allocation4], 1
    %16 = vsyncpa %s15, 0
    loop: start=0, step=1, limit=4
    $region2: #{tpu_custom_call.1} parent=1 // loop_pre_header
      _
    $region3: #{tpu_custom_call.1} parent=1 // loop_header
      %s18 = sphi 0, %s22
      %p19 = scmp.ge.s32.totalorder %s18, 4
      %s28 = sphi 0, %s30
      %s31 = sphi 0, %s28
      %s32 = sphi 0, %s31
      %s48 = sphi 0, %s32
      %s52 = sphi 0, %s52
      %s54 = sphi 0, %s52
      %s55 = sphi 0, %s54
      %s69 = sphi 0, %s55
      %s73 = sphi 0, %s73
      %s75 = sphi 0, %s73
      %s76 = sphi 0, %s75
      %s90 = sphi 0, %s76
      %s94 = sphi 0, %s94
      %s96 = sphi 0, %s94
      %s97 = sphi 0, %s96
      %s111 = sphi 0, %s97
      %s115 = sphi 0, %s115
      %s117 = sphi 0, %s115
      %s118 = sphi 0, %s117
      %s132 = sphi 0, %s118
      %s138 = sphi 0, %s140
      %s141 = sphi 0, %s138
      %s142 = sphi 0, %s141
      %s158 = sphi 0, %s142
    $region4: #{tpu_custom_call.1} parent=1 // loop_header_branch
      %21 = sbr.rel (%p19) target = $region8
    $region5: #{tpu_custom_call.1} parent=1 // loop_body
      %s23 = ssub.s32 %s18, 1
      %s24 = ssub.s32 %s18, 2
      %s25 = sadd.s32 %s18, 1
      %s26 = ssub.s32 %s18, %s25
      %p27 = scmp.eq.s32.totalorder %s26, 0
      %s29 = sadd.s32 %s28, 1
      %s30 = scalar_select %p27, %s28, %s29
      %p33 = pneg %p27
      %p34 = scmp.eq.s32.totalorder %s18, 1
      %p35 = por %p33, %p34
      %p36 = scmp.ne.s32.totalorder %s28, %s31
      %p37 = scmp.eq.s32.totalorder %s18, 0
      %p38 = por %p36, %p37
      %p39 = scmp.ne.s32.totalorder %s28, %s31
      %p40 = scmp.eq.s32.totalorder %s23, 1
      %p41 = por %p39, %p40
      %p42 = scmp.ne.s32.totalorder %s31, %s32
      %p43 = scmp.eq.s32.totalorder %s23, 0
      %p44 = por %p42, %p43
      %p45 = scmp.ne.s32.totalorder %s31, %s32
      %p46 = scmp.eq.s32.totalorder %s24, 1
      %p47 = por %p45, %p46
      %p49 = scmp.ne.s32.totalorder %s32, %s48
      %p50 = scmp.eq.s32.totalorder %s24, 0
      %p51 = por %p49, %p50
      %s53 = sadd.s32 %s52, 1
      %p56 = scmp.eq.s32.totalorder %s18, 1
      %p57 = scmp.ne.s32.totalorder %s52, %s54
      %p58 = scmp.eq.s32.totalorder %s18, 0
      %p59 = por %p57, %p58
      %p60 = scmp.ne.s32.totalorder %s52, %s54
      %p61 = scmp.eq.s32.totalorder %s23, 1
      %p62 = por %p60, %p61
      %p63 = scmp.ne.s32.totalorder %s54, %s55
      %p64 = scmp.eq.s32.totalorder %s23, 0
      %p65 = por %p63, %p64
      %p66 = scmp.ne.s32.totalorder %s54, %s55
      %p67 = scmp.eq.s32.totalorder %s24, 1
      %p68 = por %p66, %p67
      %p70 = scmp.ne.s32.totalorder %s55, %s69
      %p71 = scmp.eq.s32.totalorder %s24, 0
      %p72 = por %p70, %p71
      %s74 = sadd.s32 %s73, 1
      %p77 = scmp.eq.s32.totalorder %s18, 1
      %p78 = scmp.ne.s32.totalorder %s73, %s75
      %p79 = scmp.eq.s32.totalorder %s18, 0
      %p80 = por %p78, %p79
      %p81 = scmp.ne.s32.totalorder %s73, %s75
      %p82 = scmp.eq.s32.totalorder %s23, 1
      %p83 = por %p81, %p82
      %p84 = scmp.ne.s32.totalorder %s75, %s76
      %p85 = scmp.eq.s32.totalorder %s23, 0
      %p86 = por %p84, %p85
      %p87 = scmp.ne.s32.totalorder %s75, %s76
      %p88 = scmp.eq.s32.totalorder %s24, 1
      %p89 = por %p87, %p88
      %p91 = scmp.ne.s32.totalorder %s76, %s90
      %p92 = scmp.eq.s32.totalorder %s24, 0
      %p93 = por %p91, %p92
      %s95 = sadd.s32 %s94, 1
      %p98 = scmp.eq.s32.totalorder %s18, 1
      %p99 = scmp.ne.s32.totalorder %s94, %s96
      %p100 = scmp.eq.s32.totalorder %s18, 0
      %p101 = por %p99, %p100
      %p102 = scmp.ne.s32.totalorder %s94, %s96
      %p103 = scmp.eq.s32.totalorder %s23, 1
      %p104 = por %p102, %p103
      %p105 = scmp.ne.s32.totalorder %s96, %s97
      %p106 = scmp.eq.s32.totalorder %s23, 0
      %p107 = por %p105, %p106
      %p108 = scmp.ne.s32.totalorder %s96, %s97
      %p109 = scmp.eq.s32.totalorder %s24, 1
      %p110 = por %p108, %p109
      %p112 = scmp.ne.s32.totalorder %s97, %s111
      %p113 = scmp.eq.s32.totalorder %s24, 0
      %p114 = por %p112, %p113
      %s116 = sadd.s32 %s115, 1
      %p119 = scmp.eq.s32.totalorder %s18, 1
      %p120 = scmp.ne.s32.totalorder %s115, %s117
      %p121 = scmp.eq.s32.totalorder %s18, 0
      %p122 = por %p120, %p121
      %p123 = scmp.ne.s32.totalorder %s115, %s117
      %p124 = scmp.eq.s32.totalorder %s23, 1
      %p125 = por %p123, %p124
      %p126 = scmp.ne.s32.totalorder %s117, %s118
      %p127 = scmp.eq.s32.totalorder %s23, 0
      %p128 = por %p126, %p127
      %p129 = scmp.ne.s32.totalorder %s117, %s118
      %p130 = scmp.eq.s32.totalorder %s24, 1
      %p131 = por %p129, %p130
      %p133 = scmp.ne.s32.totalorder %s118, %s132
      %p134 = scmp.eq.s32.totalorder %s24, 0
      %p135 = por %p133, %p134
      %s136 = ssub.s32 %s18, %s25
      %p137 = scmp.eq.s32.totalorder %s136, 0
      %s139 = sadd.s32 %s138, 1
      %s140 = scalar_select %p137, %s138, %s139
      %p143 = pneg %p137
      %p144 = scmp.eq.s32.totalorder %s18, 1
      %p145 = por %p143, %p144
      %p146 = scmp.ne.s32.totalorder %s138, %s141
      %p147 = scmp.eq.s32.totalorder %s18, 0
      %p148 = por %p146, %p147
      %p149 = scmp.ne.s32.totalorder %s138, %s141
      %p150 = scmp.eq.s32.totalorder %s23, 1
      %p151 = por %p149, %p150
      %p152 = scmp.ne.s32.totalorder %s141, %s142
      %p153 = scmp.eq.s32.totalorder %s23, 0
      %p154 = por %p152, %p153
      %p155 = scmp.ne.s32.totalorder %s141, %s142
      %p156 = scmp.eq.s32.totalorder %s24, 1
      %p157 = por %p155, %p156
      %p159 = scmp.ne.s32.totalorder %s142, %s158
      %p160 = scmp.eq.s32.totalorder %s24, 0
      %p161 = por %p159, %p160
      %p162 = scmp.le.s32.totalorder 1, %s18
      %p163 = scmp.lt.s32.totalorder %s18, 3
      %p164 = pnand %p162, %p163
      %p165 = pneg %p164
      // Predicated region
      $region9: #{tpu_custom_call.1} parent=5 // pred_check
        _
      $region10: #{tpu_custom_call.1} parent=5 // pred_check_branch
        %167 = sbr.rel (%p164) target = $region12
      $region11: #{tpu_custom_call.1} parent=5 // pred_region
        %s168 = ssub.s32 %s18, 1
        // Predicated region
        $region13: #{tpu_custom_call.1} parent=11 // pred_check
          %p169 = pneg %p65
        $region14: #{tpu_custom_call.1} parent=11 // pred_check_branch
          %171 = sbr.rel (%p169) target = $region16
        $region15: #{tpu_custom_call.1} parent=11 // pred_region
          %s173 = ssub.s32 2048, 2048
          %174 = vsyncadd [#allocation6], %s173
          %s175 = sshll.u32 [#allocation5], 4
          %s176 = int_to_ptr.vmem [resolvable:$true] %s175
          %181 = dma.hbm_to_vmem [thread:$0]  %s1, 2048, %s176, [#allocation6], 128, 128, 8
        $region16: #{tpu_custom_call.1} parent=11 // pred_fallthru
          _
        // Predicated region
        $region17: #{tpu_custom_call.1} parent=11 // pred_check
          %p182 = pneg %p86
        $region18: #{tpu_custom_call.1} parent=11 // pred_check_branch
          %184 = sbr.rel (%p182) target = $region20
        $region19: #{tpu_custom_call.1} parent=11 // pred_region
          _
        $region20: #{tpu_custom_call.1} parent=11 // pred_fallthru
          _
        // Predicated region
        $region21: #{tpu_custom_call.1} parent=11 // pred_check
          %p185 = pneg %p107
        $region22: #{tpu_custom_call.1} parent=11 // pred_check_branch
          %187 = sbr.rel (%p185) target = $region24
        $region23: #{tpu_custom_call.1} parent=11 // pred_region
          %s189 = ssub.s32 2048, 2048
          %190 = vsyncadd [#allocation6], %s189
          %s191 = sshll.u32 [#allocation7], 4
          %s192 = int_to_ptr.vmem [resolvable:$true] %s191
          %197 = dma.hbm_to_vmem [thread:$0]  %s3, 2048, %s192, [#allocation6], 128, 128, 8
        $region24: #{tpu_custom_call.1} parent=11 // pred_fallthru
          _
        // Predicated region
        $region25: #{tpu_custom_call.1} parent=11 // pred_check
          %p198 = pneg %p128
        $region26: #{tpu_custom_call.1} parent=11 // pred_check_branch
          %200 = sbr.rel (%p198) target = $region28
        $region27: #{tpu_custom_call.1} parent=11 // pred_region
          _
        $region28: #{tpu_custom_call.1} parent=11 // pred_fallthru
          _
      $region12: #{tpu_custom_call.1} parent=5 // pred_fallthru
        _
      %p201 = scmp.lt.s32.totalorder %s18, 2
      // Predicated region
      $region29: #{tpu_custom_call.1} parent=5 // pred_check
        %p202 = pneg %p201
      $region30: #{tpu_custom_call.1} parent=5 // pred_check_branch
        %204 = sbr.rel (%p202) target = $region32
      $region31: #{tpu_custom_call.1} parent=5 // pred_region
        // Predicated region
        $region33: #{tpu_custom_call.1} parent=31 // pred_check
          %p205 = pneg %p38
        $region34: #{tpu_custom_call.1} parent=31 // pred_check_branch
          %207 = sbr.rel (%p205) target = $region36
        $region35: #{tpu_custom_call.1} parent=31 // pred_region
          %s208 = sand.u32 %s28, 1
          %s209 = scalar_lea.sflag [#allocation3], %s208
          %s210 = sand.u32 %s28, 1
          %s211 = smul.addr %s210, 152
          %s212 = scalar_lea.vmem [#allocation2], %s211
          %s214 = ssub.s32 2432, 2432
          %215 = vsyncadd %s209, %s214
          %s216 = smul.addr %s18, 128
          %s217 = scalar_lea.hbm %s0, %s216
          %s218 = sshll.u32 %s212, 4
          %s219 = int_to_ptr.vmem [resolvable:$true] %s218
          %224 = dma.hbm_to_vmem [thread:$0]  %s217, 2432, %s219, %s209, 256, 128, 8
        $region36: #{tpu_custom_call.1} parent=31 // pred_fallthru
          _
      $region32: #{tpu_custom_call.1} parent=5 // pred_fallthru
        _
      %p225 = scmp.le.s32.totalorder 1, %s18
      %p226 = scmp.lt.s32.totalorder %s18, 3
      %p227 = pnand %p225, %p226
      %p228 = pneg %p227
      // Predicated region
      $region37: #{tpu_custom_call.1} parent=5 // pred_check
        _
      $region38: #{tpu_custom_call.1} parent=5 // pred_check_branch
        %230 = sbr.rel (%p227) target = $region40
      $region39: #{tpu_custom_call.1} parent=5 // pred_region
        %s231 = ssub.s32 %s18, 1
        %s232 = sand.u32 %s31, 1
        %s233 = scalar_lea.sflag [#allocation3], %s232
        %s234 = sand.u32 %s31, 1
        %s235 = smul.addr %s234, 152
        %s236 = scalar_lea.vmem [#allocation2], %s235
        // Predicated region
        $region41: #{tpu_custom_call.1} parent=39 // pred_check
          %p237 = pneg %p44
        $region42: #{tpu_custom_call.1} parent=39 // pred_check_branch
          %239 = sbr.rel (%p237) target = $region44
        $region43: #{tpu_custom_call.1} parent=39 // pred_region
          %240 = dma.done %s233, 2432
        $region44: #{tpu_custom_call.1} parent=39 // pred_fallthru
          _
        // Predicated region
        $region45: #{tpu_custom_call.1} parent=39 // pred_check
          %p241 = pneg %p65
        $region46: #{tpu_custom_call.1} parent=39 // pred_check_branch
          %243 = sbr.rel (%p241) target = $region48
        $region47: #{tpu_custom_call.1} parent=39 // pred_region
          %244 = dma.done [#allocation6], 2048
        $region48: #{tpu_custom_call.1} parent=39 // pred_fallthru
          _
        // Predicated region
        $region49: #{tpu_custom_call.1} parent=39 // pred_check
          %p245 = pneg %p107
        $region50: #{tpu_custom_call.1} parent=39 // pred_check_branch
          %247 = sbr.rel (%p245) target = $region52
        $region51: #{tpu_custom_call.1} parent=39 // pred_region
          %248 = dma.done [#allocation6], 2048
        $region52: #{tpu_custom_call.1} parent=39 // pred_fallthru
          _
        %s249 = sand.u32 %s31, 1
        %s250 = scalar_lea.sflag [#allocation3], %s249
        %s251 = sand.u32 %s31, 1
        %s252 = smul.addr %s251, 152
        %s253 = scalar_lea.vmem [#allocation2], %s252
        %p254 = pneg %p44
        %p255 = pneg %p41
        %p256 = pneg %p65
        %p257 = pneg %p62
        %p258 = pneg %p86
        %p259 = pneg %p83
        %p260 = pneg %p107
        %p261 = pneg %p104
        %p262 = pneg %p128
        %p263 = pneg %p125
        %p264 = pneg %p154
        %p265 = pneg %p151
        %s266 = sand.u32 %s141, 1
        %s267 = scalar_lea.sflag [#allocation4], %s266
        %s268 = sand.u32 %s141, 1
        %s269 = smul.addr %s268, 8
        %s270 = scalar_lea.vmem [#allocation8], %s269
        %v271 = vld [vmem:[%s236] sm:$0xff]
        %v272 = vld [vmem:[%s236 + $0x8] sm:$0xff]
        %v273 = vld [vmem:[%s236 + $0x10] sm:$0xff]
        %v274 = vld [vmem:[%s236 + $0x18] sm:$0xff]
        %v275 = vld [vmem:[%s236 + $0x20] sm:$0xff]
        %v276 = vld [vmem:[%s236 + $0x28] sm:$0xff]
        %v277 = vld [vmem:[%s236 + $0x30] sm:$0xff]
        %v278 = vld [vmem:[%s236 + $0x38] sm:$0xff]
        %v279 = vld [vmem:[%s236 + $0x40] sm:$0xff]
        %v280 = vld [vmem:[%s236 + $0x48] sm:$0xff]
        %v281 = vld [vmem:[%s236 + $0x50] sm:$0xff]
        %v282 = vld [vmem:[%s236 + $0x58] sm:$0xff]
        %v283 = vld [vmem:[%s236 + $0x60] sm:$0xff]
        %v284 = vld [vmem:[%s236 + $0x68] sm:$0xff]
        %v285 = vld [vmem:[%s236 + $0x70] sm:$0xff]
        %v286 = vld [vmem:[%s236 + $0x78] sm:$0xff]
        %v287 = vld [vmem:[%s236 + $0x80] sm:$0xff]
        %v288 = vld [vmem:[%s236 + $0x88] sm:$0xff]
        %v289 = vld [vmem:[%s236 + $0x90] sm:$0xff]
        %v290 = vld [vmem:[#allocation5] sm:$0xff]
        %v291 = vld [vmem:[#allocation5 + $0x8] sm:$0xff]
        %v292 = vld [vmem:[#allocation5 + $0x10] sm:$0xff]
        %v293 = vld [vmem:[#allocation5 + $0x18] sm:$0xff]
        %s294 = scalar_lea.vmem [#allocation5], 32
        %v295 = vld [vmem:[%s294] sm:$0xff]
        %v296 = vld [vmem:[%s294 + $0x8] sm:$0xff]
        %v297 = vld [vmem:[%s294 + $0x10] sm:$0xff]
        %v298 = vld [vmem:[%s294 + $0x18] sm:$0xff]
        %vm299 = vcmask 261120
        %v301 = vsel %vm299, %v272, 0
        %v304 = vsel %vm299, %v273, 0
        %v307 = vsel %vm299, %v274, 0
        %v310 = vsel %vm299, %v275, 0
        %v313 = vsel %vm299, %v276, 0
        %v316 = vsel %vm299, %v277, 0
        %v319 = vsel %vm299, %v278, 0
        %v322 = vsel %vm299, %v279, 0
        %v325 = vsel %vm299, %v280, 0
        %v328 = vsel %vm299, %v281, 0
        %v331 = vsel %vm299, %v282, 0
        %v334 = vsel %vm299, %v283, 0
        %v337 = vsel %vm299, %v284, 0
        %v340 = vsel %vm299, %v285, 0
        %v343 = vsel %vm299, %v286, 0
        %v346 = vsel %vm299, %v287, 0
        %348 = vmatprep.subr.mxu0 0.0
        %349 = vmatpush1.msra.mxu0 %v295
        %350 = vmatprep.subr.mxu0 0.0
        %351 = vmatpush1.msra.mxu0 %v296
        %352 = vmatprep.subr.mxu0 0.0
        %353 = vmatpush1.msra.mxu0 %v297
        %354 = vmatprep.subr.mxu0 0.0
        %355 = vmatpush1.msra.mxu0 %v298
        %356 = vmatprep.subr.mxu0 0.0
        %357 = vmatpush1.msra.mxu0 0.0
        %358 = vmatprep.subr.mxu0 0.0
        %359 = vmatpush1.msra.mxu0 0.0
        %360 = vmatprep.subr.mxu0 0.0
        %361 = vmatpush1.msra.mxu0 0.0
        %362 = vmatprep.subr.mxu0 0.0
        %363 = vmatpush1.msra.mxu0 0.0
        %364 = vmatprep.subr.mxu0 0.0
        %365 = vmatpush1.msra.mxu0 0.0
        %366 = vmatprep.subr.mxu0 0.0
        %367 = vmatpush1.msra.mxu0 0.0
        %368 = vmatprep.subr.mxu0 0.0
        %369 = vmatpush1.msra.mxu0 0.0
        %370 = vmatprep.subr.mxu0 0.0
        %371 = vmatpush1.msra.mxu0 0.0
        %372 = vmatprep.subr.mxu0 0.0
        %373 = vmatpush1.msra.mxu0 0.0
        %374 = vmatprep.subr.mxu0 0.0
        %375 = vmatpush1.msra.mxu0 0.0
        %376 = vmatprep.subr.mxu0 0.0
        %377 = vmatpush1.msra.mxu0 0.0
        %378 = vmatprep.subr.mxu0 0.0
        %379 = vmatpush1.msra.mxu0 0.0
        %380 = vmatprep.subr.mxu0 0.0
        %381 = vmatpush1.msra.mxu0 0.0
        %382 = vmatprep.subr.mxu0 0.0
        %383 = vmatpush1.msra.mxu0 0.0
        %384 = vmatprep.subr.mxu0 0.0
        %385 = vmatpush1.msra.mxu0 0.0
        %386 = vmatprep.subr.mxu0 0.0
        %387 = vmatpush1.msra.mxu0 0.0
        %388 = vmatprep.subr.mxu0 0.0
        %389 = vmatpush1.msra.mxu0 0.0
        %390 = vmatprep.subr.mxu0 0.0
        %391 = vmatpush1.msra.mxu0 0.0
        %392 = vmatprep.subr.mxu0 0.0
        %393 = vmatpush1.msra.mxu0 0.0
        %394 = vmatprep.subr.mxu0 0.0
        %395 = vmatpush1.msra.mxu0 0.0
        %396 = vmatprep.subr.mxu0 0.0
        %397 = vmatpush1.msra.mxu0 0.0
        %398 = vmatprep.subr.mxu0 0.0
        %399 = vmatpush1.msra.mxu0 0.0
        %400 = vmatprep.subr.mxu0 0.0
        %401 = vmatpush1.msra.mxu0 0.0
        %402 = vmatprep.subr.mxu0 0.0
        %403 = vmatpush1.msra.mxu0 0.0
        %404 = vmatprep.subr.mxu0 0.0
        %405 = vmatpush1.msra.mxu0 0.0
        %406 = vmatprep.subr.mxu0 0.0
        %407 = vmatpush1.msra.mxu0 0.0
        %408 = vmatprep.subr.mxu0 0.0
        %409 = vmatpush1.msra.mxu0 0.0
        %410 = vmatprep.subr.mxu0 0.0
        %411 = vmatpush1.msra.mxu0 0.0
        %412 = vmatprep.mubr.f32.mxu0 0.0
        %413 = vmatmul.mubr.f32.gmra.mrb[0].mxu0 %v301
        %v414 = vpop.f32.mrb[0].mxu0
        %v415 = vadd.f32 0.0, %v414
        %v416 = vpop.f32.mrb[0].mxu0
        %417 = vmatprep.mubr.f32.mxu0 0.0
        %418 = vmatmul.mubr.f32.gmra.mrb[0].mxu0 %v304
        %v419 = vpop.f32.mrb[0].mxu0
        %v420 = vadd.f32 0.0, %v419
        %v421 = vpop.f32.mrb[0].mxu0
        %422 = vmatprep.mubr.f32.mxu0 0.0
        %423 = vmatmul.mubr.f32.gmra.mrb[0].mxu0 %v307
        %v424 = vpop.f32.mrb[0].mxu0
        %v425 = vadd.f32 0.0, %v424
        %v426 = vpop.f32.mrb[0].mxu0
        %427 = vmatprep.mubr.f32.mxu0 0.0
        %428 = vmatmul.mubr.f32.gmra.mrb[0].mxu0 %v310
        %v429 = vpop.f32.mrb[0].mxu0
        %v430 = vadd.f32 0.0, %v429
        %v431 = vpop.f32.mrb[0].mxu0
        %432 = vmatprep.mubr.f32.mxu0 0.0
        %433 = vmatmul.mubr.f32.gmra.mrb[0].mxu0 %v313
        %v434 = vpop.f32.mrb[0].mxu0
        %v435 = vadd.f32 0.0, %v434
        %v436 = vpop.f32.mrb[0].mxu0
        %437 = vmatprep.mubr.f32.mxu0 0.0
        %438 = vmatmul.mubr.f32.gmra.mrb[0].mxu0 %v316
        %v439 = vpop.f32.mrb[0].mxu0
        %v440 = vadd.f32 0.0, %v439
        %v441 = vpop.f32.mrb[0].mxu0
        %442 = vmatprep.mubr.f32.mxu0 0.0
        %443 = vmatmul.mubr.f32.gmra.mrb[0].mxu0 %v319
        %v444 = vpop.f32.mrb[0].mxu0
        %v445 = vadd.f32 0.0, %v444
        %v446 = vpop.f32.mrb[0].mxu0
        %447 = vmatprep.mubr.f32.mxu0 0.0
        %448 = vmatmul.mubr.f32.gmra.mrb[0].mxu0 %v322
        %v449 = vpop.f32.mrb[0].mxu0
        %v450 = vadd.f32 0.0, %v449
        %v451 = vpop.f32.mrb[0].mxu0
        %452 = vmatprep.mubr.f32.mxu0 0.0
        %453 = vmatmul.mubr.f32.gmra.mrb[0].mxu0 %v325
        %v454 = vpop.f32.mrb[0].mxu0
        %v455 = vadd.f32 0.0, %v454
        %v456 = vpop.f32.mrb[0].mxu0
        %457 = vmatprep.mubr.f32.mxu0 0.0
        %458 = vmatmul.mubr.f32.gmra.mrb[0].mxu0 %v328
        %v459 = vpop.f32.mrb[0].mxu0
        %v460 = vadd.f32 0.0, %v459
        %v461 = vpop.f32.mrb[0].mxu0
        %462 = vmatprep.mubr.f32.mxu0 0.0
        %463 = vmatmul.mubr.f32.gmra.mrb[0].mxu0 %v331
        %v464 = vpop.f32.mrb[0].mxu0
        %v465 = vadd.f32 0.0, %v464
        %v466 = vpop.f32.mrb[0].mxu0
        %467 = vmatprep.mubr.f32.mxu0 0.0
        %468 = vmatmul.mubr.f32.gmra.mrb[0].mxu0 %v334
        %v469 = vpop.f32.mrb[0].mxu0
        %v470 = vadd.f32 0.0, %v469
        %v471 = vpop.f32.mrb[0].mxu0
        %472 = vmatprep.mubr.f32.mxu0 0.0
        %473 = vmatmul.mubr.f32.gmra.mrb[0].mxu0 %v337
        %v474 = vpop.f32.mrb[0].mxu0
        %v475 = vadd.f32 0.0, %v474
        %v476 = vpop.f32.mrb[0].mxu0
        %477 = vmatprep.mubr.f32.mxu0 0.0
        %478 = vmatmul.mubr.f32.gmra.mrb[0].mxu0 %v340
        %v479 = vpop.f32.mrb[0].mxu0
        %v480 = vadd.f32 0.0, %v479
        %v481 = vpop.f32.mrb[0].mxu0
        %482 = vmatprep.mubr.f32.mxu0 0.0
        %483 = vmatmul.mubr.f32.gmra.mrb[0].mxu0 %v343
        %v484 = vpop.f32.mrb[0].mxu0
        %v485 = vadd.f32 0.0, %v484
        %v486 = vpop.f32.mrb[0].mxu0
        %487 = vmatprep.mubr.f32.mxu0 0.0
        %488 = vmatmul.mubr.f32.gmra.mrb[0].mxu0 %v346
        %v489 = vpop.f32.mrb[0].mxu0
        %v490 = vadd.f32 0.0, %v489
        %v491 = vpop.f32.mrb[0].mxu0
        %492 = vdwg.mxu0
        %v494 = vsel %vm299, %v271, 0
        %496 = vmatprep.subr.mxu0 0.0
        %497 = vmatpush1.msra.mxu0 %v290
        %498 = vmatprep.subr.mxu0 0.0
        %499 = vmatpush1.msra.mxu0 %v291
        %500 = vmatprep.subr.mxu0 0.0
        %501 = vmatpush1.msra.mxu0 %v292
        %502 = vmatprep.subr.mxu0 0.0
        %503 = vmatpush1.msra.mxu0 %v293
        %504 = vmatprep.subr.mxu0 0.0
        %505 = vmatpush1.msra.mxu0 0.0
        %506 = vmatprep.subr.mxu0 0.0
        %507 = vmatpush1.msra.mxu0 0.0
        %508 = vmatprep.subr.mxu0 0.0
        %509 = vmatpush1.msra.mxu0 0.0
        %510 = vmatprep.subr.mxu0 0.0
        %511 = vmatpush1.msra.mxu0 0.0
        %512 = vmatprep.subr.mxu0 0.0
        %513 = vmatpush1.msra.mxu0 0.0
        %514 = vmatprep.subr.mxu0 0.0
        %515 = vmatpush1.msra.mxu0 0.0
        %516 = vmatprep.subr.mxu0 0.0
        %517 = vmatpush1.msra.mxu0 0.0
        %518 = vmatprep.subr.mxu0 0.0
        %519 = vmatpush1.msra.mxu0 0.0
        %520 = vmatprep.subr.mxu0 0.0
        %521 = vmatpush1.msra.mxu0 0.0
        %522 = vmatprep.subr.mxu0 0.0
        %523 = vmatpush1.msra.mxu0 0.0
        %524 = vmatprep.subr.mxu0 0.0
        %525 = vmatpush1.msra.mxu0 0.0
        %526 = vmatprep.subr.mxu0 0.0
        %527 = vmatpush1.msra.mxu0 0.0
        %528 = vmatprep.subr.mxu0 0.0
        %529 = vmatpush1.msra.mxu0 0.0
        %530 = vmatprep.subr.mxu0 0.0
        %531 = vmatpush1.msra.mxu0 0.0
        %532 = vmatprep.subr.mxu0 0.0
        %533 = vmatpush1.msra.mxu0 0.0
        %534 = vmatprep.subr.mxu0 0.0
        %535 = vmatpush1.msra.mxu0 0.0
        %536 = vmatprep.subr.mxu0 0.0
        %537 = vmatpush1.msra.mxu0 0.0
        %538 = vmatprep.subr.mxu0 0.0
        %539 = vmatpush1.msra.mxu0 0.0
        %540 = vmatprep.subr.mxu0 0.0
        %541 = vmatpush1.msra.mxu0 0.0
        %542 = vmatprep.subr.mxu0 0.0
        %543 = vmatpush1.msra.mxu0 0.0
        %544 = vmatprep.subr.mxu0 0.0
        %545 = vmatpush1.msra.mxu0 0.0
        %546 = vmatprep.subr.mxu0 0.0
        %547 = vmatpush1.msra.mxu0 0.0
        %548 = vmatprep.subr.mxu0 0.0
        %549 = vmatpush1.msra.mxu0 0.0
        %550 = vmatprep.subr.mxu0 0.0
        %551 = vmatpush1.msra.mxu0 0.0
        %552 = vmatprep.subr.mxu0 0.0
        %553 = vmatpush1.msra.mxu0 0.0
        %554 = vmatprep.subr.mxu0 0.0
        %555 = vmatpush1.msra.mxu0 0.0
        %556 = vmatprep.subr.mxu0 0.0
        %557 = vmatpush1.msra.mxu0 0.0
        %558 = vmatprep.subr.mxu0 0.0
        %559 = vmatpush1.msra.mxu0 0.0
        %560 = vmatprep.mubr.f32.mxu0 0.0
        %561 = vmatmul.mubr.f32.gmra.mrb[0].mxu0 %v494
        %v562 = vpop.f32.mrb[0].mxu0
        %v563 = vadd.f32 %v415, %v562
        %v564 = vpop.f32.mrb[0].mxu0
        %565 = vmatprep.mubr.f32.mxu0 0.0
        %566 = vmatmul.mubr.f32.gmra.mrb[0].mxu0 %v301
        %v567 = vpop.f32.mrb[0].mxu0
        %v568 = vadd.f32 %v420, %v567
        %v569 = vpop.f32.mrb[0].mxu0
        %570 = vmatprep.mubr.f32.mxu0 0.0
        %571 = vmatmul.mubr.f32.gmra.mrb[0].mxu0 %v304
        %v572 = vpop.f32.mrb[0].mxu0
        %v573 = vadd.f32 %v425, %v572
        %v574 = vpop.f32.mrb[0].mxu0
        %575 = vmatprep.mubr.f32.mxu0 0.0
        %576 = vmatmul.mubr.f32.gmra.mrb[0].mxu0 %v307
        %v577 = vpop.f32.mrb[0].mxu0
        %v578 = vadd.f32 %v430, %v577
        %v579 = vpop.f32.mrb[0].mxu0
        %580 = vmatprep.mubr.f32.mxu0 0.0
        %581 = vmatmul.mubr.f32.gmra.mrb[0].mxu0 %v310
        %v582 = vpop.f32.mrb[0].mxu0
        %v583 = vadd.f32 %v435, %v582
        %v584 = vpop.f32.mrb[0].mxu0
        %585 = vmatprep.mubr.f32.mxu0 0.0
        %586 = vmatmul.mubr.f32.gmra.mrb[0].mxu0 %v313
        %v587 = vpop.f32.mrb[0].mxu0
        %v588 = vadd.f32 %v440, %v587
        %v589 = vpop.f32.mrb[0].mxu0
        %590 = vmatprep.mubr.f32.mxu0 0.0
        %591 = vmatmul.mubr.f32.gmra.mrb[0].mxu0 %v316
        %v592 = vpop.f32.mrb[0].mxu0
        %v593 = vadd.f32 %v445, %v592
        %v594 = vpop.f32.mrb[0].mxu0
        %595 = vmatprep.mubr.f32.mxu0 0.0
        %596 = vmatmul.mubr.f32.gmra.mrb[0].mxu0 %v319
        %v597 = vpop.f32.mrb[0].mxu0
        %v598 = vadd.f32 %v450, %v597
        %v599 = vpop.f32.mrb[0].mxu0
        %600 = vmatprep.mubr.f32.mxu0 0.0
        %601 = vmatmul.mubr.f32.gmra.mrb[0].mxu0 %v322
        %v602 = vpop.f32.mrb[0].mxu0
        %v603 = vadd.f32 %v455, %v602
        %v604 = vpop.f32.mrb[0].mxu0
        %605 = vmatprep.mubr.f32.mxu0 0.0
        %606 = vmatmul.mubr.f32.gmra.mrb[0].mxu0 %v325
        %v607 = vpop.f32.mrb[0].mxu0
        %v608 = vadd.f32 %v460, %v607
        %v609 = vpop.f32.mrb[0].mxu0
        %610 = vmatprep.mubr.f32.mxu0 0.0
        %611 = vmatmul.mubr.f32.gmra.mrb[0].mxu0 %v328
        %v612 = vpop.f32.mrb[0].mxu0
        %v613 = vadd.f32 %v465, %v612
        %v614 = vpop.f32.mrb[0].mxu0
        %615 = vmatprep.mubr.f32.mxu0 0.0
        %616 = vmatmul.mubr.f32.gmra.mrb[0].mxu0 %v331
        %v617 = vpop.f32.mrb[0].mxu0
        %v618 = vadd.f32 %v470, %v617
        %v619 = vpop.f32.mrb[0].mxu0
        %620 = vmatprep.mubr.f32.mxu0 0.0
        %621 = vmatmul.mubr.f32.gmra.mrb[0].mxu0 %v334
        %v622 = vpop.f32.mrb[0].mxu0
        %v623 = vadd.f32 %v475, %v622
        %v624 = vpop.f32.mrb[0].mxu0
        %625 = vmatprep.mubr.f32.mxu0 0.0
        %626 = vmatmul.mubr.f32.gmra.mrb[0].mxu0 %v337
        %v627 = vpop.f32.mrb[0].mxu0
        %v628 = vadd.f32 %v480, %v627
        %v629 = vpop.f32.mrb[0].mxu0
        %630 = vmatprep.mubr.f32.mxu0 0.0
        %631 = vmatmul.mubr.f32.gmra.mrb[0].mxu0 %v340
        %v632 = vpop.f32.mrb[0].mxu0
        %v633 = vadd.f32 %v485, %v632
        %v634 = vpop.f32.mrb[0].mxu0
        %635 = vmatprep.mubr.f32.mxu0 0.0
        %636 = vmatmul.mubr.f32.gmra.mrb[0].mxu0 %v343
        %v637 = vpop.f32.mrb[0].mxu0
        %v638 = vadd.f32 %v490, %v637
        %v639 = vpop.f32.mrb[0].mxu0
        %640 = vdwg.mxu0
        %s641 = scalar_lea.vmem [#allocation5], 64
        %v642 = vld [vmem:[%s641] sm:$0xff]
        %v643 = vld [vmem:[%s641 + $0x8] sm:$0xff]
        %v644 = vld [vmem:[%s641 + $0x10] sm:$0xff]
        %v645 = vld [vmem:[%s641 + $0x18] sm:$0xff]
        %v647 = vsel %vm299, %v288, 0
        %649 = vmatprep.subr.mxu0 0.0
        %650 = vmatpush1.msra.mxu0 %v642
        %651 = vmatprep.subr.mxu0 0.0
        %652 = vmatpush1.msra.mxu0 %v643
        %653 = vmatprep.subr.mxu0 0.0
        %654 = vmatpush1.msra.mxu0 %v644
        %655 = vmatprep.subr.mxu0 0.0
        %656 = vmatpush1.msra.mxu0 %v645
        %657 = vmatprep.subr.mxu0 0.0
        %658 = vmatpush1.msra.mxu0 0.0
        %659 = vmatprep.subr.mxu0 0.0
        %660 = vmatpush1.msra.mxu0 0.0
        %661 = vmatprep.subr.mxu0 0.0
        %662 = vmatpush1.msra.mxu0 0.0
        %663 = vmatprep.subr.mxu0 0.0
        %664 = vmatpush1.msra.mxu0 0.0
        %665 = vmatprep.subr.mxu0 0.0
        %666 = vmatpush1.msra.mxu0 0.0
        %667 = vmatprep.subr.mxu0 0.0
        %668 = vmatpush1.msra.mxu0 0.0
        %669 = vmatprep.subr.mxu0 0.0
        %670 = vmatpush1.msra.mxu0 0.0
        %671 = vmatprep.subr.mxu0 0.0
        %672 = vmatpush1.msra.mxu0 0.0
        %673 = vmatprep.subr.mxu0 0.0
        %674 = vmatpush1.msra.mxu0 0.0
        %675 = vmatprep.subr.mxu0 0.0
        %676 = vmatpush1.msra.mxu0 0.0
        %677 = vmatprep.subr.mxu0 0.0
        %678 = vmatpush1.msra.mxu0 0.0
        %679 = vmatprep.subr.mxu0 0.0
        %680 = vmatpush1.msra.mxu0 0.0
        %681 = vmatprep.subr.mxu0 0.0
        %682 = vmatpush1.msra.mxu0 0.0
        %683 = vmatprep.subr.mxu0 0.0
        %684 = vmatpush1.msra.mxu0 0.0
        %685 = vmatprep.subr.mxu0 0.0
        %686 = vmatpush1.msra.mxu0 0.0
        %687 = vmatprep.subr.mxu0 0.0
        %688 = vmatpush1.msra.mxu0 0.0
        %689 = vmatprep.subr.mxu0 0.0
        %690 = vmatpush1.msra.mxu0 0.0
        %691 = vmatprep.subr.mxu0 0.0
        %692 = vmatpush1.msra.mxu0 0.0
        %693 = vmatprep.subr.mxu0 0.0
        %694 = vmatpush1.msra.mxu0 0.0
        %695 = vmatprep.subr.mxu0 0.0
        %696 = vmatpush1.msra.mxu0 0.0
        %697 = vmatprep.subr.mxu0 0.0
        %698 = vmatpush1.msra.mxu0 0.0
        %699 = vmatprep.subr.mxu0 0.0
        %700 = vmatpush1.msra.mxu0 0.0
        %701 = vmatprep.subr.mxu0 0.0
        %702 = vmatpush1.msra.mxu0 0.0
        %703 = vmatprep.subr.mxu0 0.0
        %704 = vmatpush1.msra.mxu0 0.0
        %705 = vmatprep.subr.mxu0 0.0
        %706 = vmatpush1.msra.mxu0 0.0
        %707 = vmatprep.subr.mxu0 0.0
        %708 = vmatpush1.msra.mxu0 0.0
        %709 = vmatprep.subr.mxu0 0.0
        %710 = vmatpush1.msra.mxu0 0.0
        %711 = vmatprep.subr.mxu0 0.0
        %712 = vmatpush1.msra.mxu0 0.0
        %713 = vmatprep.mubr.f32.mxu0 0.0
        %714 = vmatmul.mubr.f32.gmra.mrb[0].mxu0 %v304
        %v715 = vpop.f32.mrb[0].mxu0
        %v716 = vadd.f32 0.0, %v715
        %v717 = vpop.f32.mrb[0].mxu0
        %718 = vmatprep.mubr.f32.mxu0 0.0
        %719 = vmatmul.mubr.f32.gmra.mrb[0].mxu0 %v307
        %v720 = vpop.f32.mrb[0].mxu0
        %v721 = vadd.f32 0.0, %v720
        %v722 = vpop.f32.mrb[0].mxu0
        %723 = vmatprep.mubr.f32.mxu0 0.0
        %724 = vmatmul.mubr.f32.gmra.mrb[0].mxu0 %v310
        %v725 = vpop.f32.mrb[0].mxu0
        %v726 = vadd.f32 0.0, %v725
        %v727 = vpop.f32.mrb[0].mxu0
        %728 = vmatprep.mubr.f32.mxu0 0.0
        %729 = vmatmul.mubr.f32.gmra.mrb[0].mxu0 %v313
        %v730 = vpop.f32.mrb[0].mxu0
        %v731 = vadd.f32 0.0, %v730
        %v732 = vpop.f32.mrb[0].mxu0
        %733 = vmatprep.mubr.f32.mxu0 0.0
        %734 = vmatmul.mubr.f32.gmra.mrb[0].mxu0 %v316
        %v735 = vpop.f32.mrb[0].mxu0
        %v736 = vadd.f32 0.0, %v735
        %v737 = vpop.f32.mrb[0].mxu0
        %738 = vmatprep.mubr.f32.mxu0 0.0
        %739 = vmatmul.mubr.f32.gmra.mrb[0].mxu0 %v319
        %v740 = vpop.f32.mrb[0].mxu0
        %v741 = vadd.f32 0.0, %v740
        %v742 = vpop.f32.mrb[0].mxu0
        %743 = vmatprep.mubr.f32.mxu0 0.0
        %744 = vmatmul.mubr.f32.gmra.mrb[0].mxu0 %v322
        %v745 = vpop.f32.mrb[0].mxu0
        %v746 = vadd.f32 0.0, %v745
        %v747 = vpop.f32.mrb[0].mxu0
        %748 = vmatprep.mubr.f32.mxu0 0.0
        %749 = vmatmul.mubr.f32.gmra.mrb[0].mxu0 %v325
        %v750 = vpop.f32.mrb[0].mxu0
        %v751 = vadd.f32 0.0, %v750
        %v752 = vpop.f32.mrb[0].mxu0
        %753 = vmatprep.mubr.f32.mxu0 0.0
        %754 = vmatmul.mubr.f32.gmra.mrb[0].mxu0 %v328
        %v755 = vpop.f32.mrb[0].mxu0
        %v756 = vadd.f32 0.0, %v755
        %v757 = vpop.f32.mrb[0].mxu0
        %758 = vmatprep.mubr.f32.mxu0 0.0
        %759 = vmatmul.mubr.f32.gmra.mrb[0].mxu0 %v331
        %v760 = vpop.f32.mrb[0].mxu0
        %v761 = vadd.f32 0.0, %v760
        %v762 = vpop.f32.mrb[0].mxu0
        %763 = vmatprep.mubr.f32.mxu0 0.0
        %764 = vmatmul.mubr.f32.gmra.mrb[0].mxu0 %v334
        %v765 = vpop.f32.mrb[0].mxu0
        %v766 = vadd.f32 0.0, %v765
        %v767 = vpop.f32.mrb[0].mxu0
        %768 = vmatprep.mubr.f32.mxu0 0.0
        %769 = vmatmul.mubr.f32.gmra.mrb[0].mxu0 %v337
        %v770 = vpop.f32.mrb[0].mxu0
        %v771 = vadd.f32 0.0, %v770
        %v772 = vpop.f32.mrb[0].mxu0
        %773 = vmatprep.mubr.f32.mxu0 0.0
        %774 = vmatmul.mubr.f32.gmra.mrb[0].mxu0 %v340
        %v775 = vpop.f32.mrb[0].mxu0
        %v776 = vadd.f32 0.0, %v775
        %v777 = vpop.f32.mrb[0].mxu0
        %778 = vmatprep.mubr.f32.mxu0 0.0
        %779 = vmatmul.mubr.f32.gmra.mrb[0].mxu0 %v343
        %v780 = vpop.f32.mrb[0].mxu0
        %v781 = vadd.f32 0.0, %v780
        %v782 = vpop.f32.mrb[0].mxu0
        %783 = vmatprep.mubr.f32.mxu0 0.0
        %784 = vmatmul.mubr.f32.gmra.mrb[0].mxu0 %v346
        %v785 = vpop.f32.mrb[0].mxu0
        %v786 = vadd.f32 0.0, %v785
        %v787 = vpop.f32.mrb[0].mxu0
        %788 = vmatprep.mubr.f32.mxu0 0.0
        %789 = vmatmul.mubr.f32.gmra.mrb[0].mxu0 %v647
        %v790 = vpop.f32.mrb[0].mxu0
        %v791 = vadd.f32 0.0, %v790
        %v792 = vpop.f32.mrb[0].mxu0
        %793 = vdwg.mxu0
        %v794 = vadd.f32 %v563, %v716
        %v795 = vadd.f32 %v568, %v721
        %v796 = vadd.f32 %v573, %v726
        %v797 = vadd.f32 %v578, %v731
        %v798 = vadd.f32 %v583, %v736
        %v799 = vadd.f32 %v588, %v741
        %v800 = vadd.f32 %v593, %v746
        %v801 = vadd.f32 %v598, %v751
        %v802 = vadd.f32 %v603, %v756
        %v803 = vadd.f32 %v608, %v761
        %v804 = vadd.f32 %v613, %v766
        %v805 = vadd.f32 %v618, %v771
        %v806 = vadd.f32 %v623, %v776
        %v807 = vadd.f32 %v628, %v781
        %v808 = vadd.f32 %v633, %v786
        %v809 = vadd.f32 %v638, %v791
        %s810 = scalar_lea.vmem [#allocation5], 96
        %v811 = vld [vmem:[%s810] sm:$0xff]
        %v812 = vld [vmem:[%s810 + $0x8] sm:$0xff]
        %v813 = vld [vmem:[%s810 + $0x10] sm:$0xff]
        %v814 = vld [vmem:[%s810 + $0x18] sm:$0xff]
        %v816 = vsel %vm299, %v289, 0
        %818 = vmatprep.subr.mxu0 0.0
        %819 = vmatpush1.msra.mxu0 %v811
        %820 = vmatprep.subr.mxu0 0.0
        %821 = vmatpush1.msra.mxu0 %v812
        %822 = vmatprep.subr.mxu0 0.0
        %823 = vmatpush1.msra.mxu0 %v813
        %824 = vmatprep.subr.mxu0 0.0
        %825 = vmatpush1.msra.mxu0 %v814
        %826 = vmatprep.subr.mxu0 0.0
        %827 = vmatpush1.msra.mxu0 0.0
        %828 = vmatprep.subr.mxu0 0.0
        %829 = vmatpush1.msra.mxu0 0.0
        %830 = vmatprep.subr.mxu0 0.0
        %831 = vmatpush1.msra.mxu0 0.0
        %832 = vmatprep.subr.mxu0 0.0
        %833 = vmatpush1.msra.mxu0 0.0
        %834 = vmatprep.subr.mxu0 0.0
        %835 = vmatpush1.msra.mxu0 0.0
        %836 = vmatprep.subr.mxu0 0.0
        %837 = vmatpush1.msra.mxu0 0.0
        %838 = vmatprep.subr.mxu0 0.0
        %839 = vmatpush1.msra.mxu0 0.0
        %840 = vmatprep.subr.mxu0 0.0
        %841 = vmatpush1.msra.mxu0 0.0
        %842 = vmatprep.subr.mxu0 0.0
        %843 = vmatpush1.msra.mxu0 0.0
        %844 = vmatprep.subr.mxu0 0.0
        %845 = vmatpush1.msra.mxu0 0.0
        %846 = vmatprep.subr.mxu0 0.0
        %847 = vmatpush1.msra.mxu0 0.0
        %848 = vmatprep.subr.mxu0 0.0
        %849 = vmatpush1.msra.mxu0 0.0
        %850 = vmatprep.subr.mxu0 0.0
        %851 = vmatpush1.msra.mxu0 0.0
        %852 = vmatprep.subr.mxu0 0.0
        %853 = vmatpush1.msra.mxu0 0.0
        %854 = vmatprep.subr.mxu0 0.0
        %855 = vmatpush1.msra.mxu0 0.0
        %856 = vmatprep.subr.mxu0 0.0
        %857 = vmatpush1.msra.mxu0 0.0
        %858 = vmatprep.subr.mxu0 0.0
        %859 = vmatpush1.msra.mxu0 0.0
        %860 = vmatprep.subr.mxu0 0.0
        %861 = vmatpush1.msra.mxu0 0.0
        %862 = vmatprep.subr.mxu0 0.0
        %863 = vmatpush1.msra.mxu0 0.0
        %864 = vmatprep.subr.mxu0 0.0
        %865 = vmatpush1.msra.mxu0 0.0
        %866 = vmatprep.subr.mxu0 0.0
        %867 = vmatpush1.msra.mxu0 0.0
        %868 = vmatprep.subr.mxu0 0.0
        %869 = vmatpush1.msra.mxu0 0.0
        %870 = vmatprep.subr.mxu0 0.0
        %871 = vmatpush1.msra.mxu0 0.0
        %872 = vmatprep.subr.mxu0 0.0
        %873 = vmatpush1.msra.mxu0 0.0
        %874 = vmatprep.subr.mxu0 0.0
        %875 = vmatpush1.msra.mxu0 0.0
        %876 = vmatprep.subr.mxu0 0.0
        %877 = vmatpush1.msra.mxu0 0.0
        %878 = vmatprep.subr.mxu0 0.0
        %879 = vmatpush1.msra.mxu0 0.0
        %880 = vmatprep.subr.mxu0 0.0
        %881 = vmatpush1.msra.mxu0 0.0
        %882 = vmatprep.mubr.f32.mxu0 0.0
        %883 = vmatmul.mubr.f32.gmra.mrb[0].mxu0 %v307
        %v884 = vpop.f32.mrb[0].mxu0
        %v885 = vadd.f32 0.0, %v884
        %v886 = vpop.f32.mrb[0].mxu0
        %887 = vmatprep.mubr.f32.mxu0 0.0
        %888 = vmatmul.mubr.f32.gmra.mrb[0].mxu0 %v310
        %v889 = vpop.f32.mrb[0].mxu0
        %v890 = vadd.f32 0.0, %v889
        %v891 = vpop.f32.mrb[0].mxu0
        %892 = vmatprep.mubr.f32.mxu0 0.0
        %893 = vmatmul.mubr.f32.gmra.mrb[0].mxu0 %v313
        %v894 = vpop.f32.mrb[0].mxu0
        %v895 = vadd.f32 0.0, %v894
        %v896 = vpop.f32.mrb[0].mxu0
        %897 = vmatprep.mubr.f32.mxu0 0.0
        %898 = vmatmul.mubr.f32.gmra.mrb[0].mxu0 %v316
        %v899 = vpop.f32.mrb[0].mxu0
        %v900 = vadd.f32 0.0, %v899
        %v901 = vpop.f32.mrb[0].mxu0
        %902 = vmatprep.mubr.f32.mxu0 0.0
        %903 = vmatmul.mubr.f32.gmra.mrb[0].mxu0 %v319
        %v904 = vpop.f32.mrb[0].mxu0
        %v905 = vadd.f32 0.0, %v904
        %v906 = vpop.f32.mrb[0].mxu0
        %907 = vmatprep.mubr.f32.mxu0 0.0
        %908 = vmatmul.mubr.f32.gmra.mrb[0].mxu0 %v322
        %v909 = vpop.f32.mrb[0].mxu0
        %v910 = vadd.f32 0.0, %v909
        %v911 = vpop.f32.mrb[0].mxu0
        %912 = vmatprep.mubr.f32.mxu0 0.0
        %913 = vmatmul.mubr.f32.gmra.mrb[0].mxu0 %v325
        %v914 = vpop.f32.mrb[0].mxu0
        %v915 = vadd.f32 0.0, %v914
        %v916 = vpop.f32.mrb[0].mxu0
        %917 = vmatprep.mubr.f32.mxu0 0.0
        %918 = vmatmul.mubr.f32.gmra.mrb[0].mxu0 %v328
        %v919 = vpop.f32.mrb[0].mxu0
        %v920 = vadd.f32 0.0, %v919
        %v921 = vpop.f32.mrb[0].mxu0
        %922 = vmatprep.mubr.f32.mxu0 0.0
        %923 = vmatmul.mubr.f32.gmra.mrb[0].mxu0 %v331
        %v924 = vpop.f32.mrb[0].mxu0
        %v925 = vadd.f32 0.0, %v924
        %v926 = vpop.f32.mrb[0].mxu0
        %927 = vmatprep.mubr.f32.mxu0 0.0
        %928 = vmatmul.mubr.f32.gmra.mrb[0].mxu0 %v334
        %v929 = vpop.f32.mrb[0].mxu0
        %v930 = vadd.f32 0.0, %v929
        %v931 = vpop.f32.mrb[0].mxu0
        %932 = vmatprep.mubr.f32.mxu0 0.0
        %933 = vmatmul.mubr.f32.gmra.mrb[0].mxu0 %v337
        %v934 = vpop.f32.mrb[0].mxu0
        %v935 = vadd.f32 0.0, %v934
        %v936 = vpop.f32.mrb[0].mxu0
        %937 = vmatprep.mubr.f32.mxu0 0.0
        %938 = vmatmul.mubr.f32.gmra.mrb[0].mxu0 %v340
        %v939 = vpop.f32.mrb[0].mxu0
        %v940 = vadd.f32 0.0, %v939
        %v941 = vpop.f32.mrb[0].mxu0
        %942 = vmatprep.mubr.f32.mxu0 0.0
        %943 = vmatmul.mubr.f32.gmra.mrb[0].mxu0 %v343
        %v944 = vpop.f32.mrb[0].mxu0
        %v945 = vadd.f32 0.0, %v944
        %v946 = vpop.f32.mrb[0].mxu0
        %947 = vmatprep.mubr.f32.mxu0 0.0
        %948 = vmatmul.mubr.f32.gmra.mrb[0].mxu0 %v346
        %v949 = vpop.f32.mrb[0].mxu0
        %v950 = vadd.f32 0.0, %v949
        %v951 = vpop.f32.mrb[0].mxu0
        %952 = vmatprep.mubr.f32.mxu0 0.0
        %953 = vmatmul.mubr.f32.gmra.mrb[0].mxu0 %v647
        %v954 = vpop.f32.mrb[0].mxu0
        %v955 = vadd.f32 0.0, %v954
        %v956 = vpop.f32.mrb[0].mxu0
        %957 = vmatprep.mubr.f32.mxu0 0.0
        %958 = vmatmul.mubr.f32.gmra.mrb[0].mxu0 %v816
        %v959 = vpop.f32.mrb[0].mxu0
        %v960 = vadd.f32 0.0, %v959
        %v961 = vpop.f32.mrb[0].mxu0
        %962 = vdwg.mxu0
        %v963 = vadd.f32 %v794, %v885
        %v964 = vadd.f32 %v795, %v890
        %v965 = vadd.f32 %v796, %v895
        %v966 = vadd.f32 %v797, %v900
        %v967 = vadd.f32 %v798, %v905
        %v968 = vadd.f32 %v799, %v910
        %v969 = vadd.f32 %v800, %v915
        %v970 = vadd.f32 %v801, %v920
        %v971 = vadd.f32 %v802, %v925
        %v972 = vadd.f32 %v803, %v930
        %v973 = vadd.f32 %v804, %v935
        %v974 = vadd.f32 %v805, %v940
        %v975 = vadd.f32 %v806, %v945
        %v976 = vadd.f32 %v807, %v950
        %v977 = vadd.f32 %v808, %v955
        %v978 = vadd.f32 %v809, %v960
        %v979 = vld [vmem:[%s2] sm:$0x1]
        %v981 = vlaneseq
        %v982 = vshrl.u32 %v981, 7
        %v983 = vsub.s32 0, %v982
        %v984 = vrot.slane %v979, %v983
        %v986 = vadd.f32 %v963, %v984
        %v987 = vadd.f32 %v964, %v984
        %v988 = vadd.f32 %v965, %v984
        %v989 = vadd.f32 %v966, %v984
        %v990 = vadd.f32 %v967, %v984
        %v991 = vadd.f32 %v968, %v984
        %v992 = vadd.f32 %v969, %v984
        %v993 = vadd.f32 %v970, %v984
        %v994 = vadd.f32 %v971, %v984
        %v995 = vadd.f32 %v972, %v984
        %v996 = vadd.f32 %v973, %v984
        %v997 = vadd.f32 %v974, %v984
        %v998 = vadd.f32 %v975, %v984
        %v999 = vadd.f32 %v976, %v984
        %v1000 = vadd.f32 %v977, %v984
        %v1001 = vadd.f32 %v978, %v984
        %v1002 = vmax.f32 %v986, 0.0
        %v1003 = vmax.f32 %v987, 0.0
        %v1004 = vmax.f32 %v988, 0.0
        %v1005 = vmax.f32 %v989, 0.0
        %v1006 = vmax.f32 %v990, 0.0
        %v1007 = vmax.f32 %v991, 0.0
        %v1008 = vmax.f32 %v992, 0.0
        %v1009 = vmax.f32 %v993, 0.0
        %v1010 = vmax.f32 %v994, 0.0
        %v1011 = vmax.f32 %v995, 0.0
        %v1012 = vmax.f32 %v996, 0.0
        %v1013 = vmax.f32 %v997, 0.0
        %v1014 = vmax.f32 %v998, 0.0
        %v1015 = vmax.f32 %v999, 0.0
        %v1016 = vmax.f32 %v1000, 0.0
        %v1017 = vmax.f32 %v1001, 0.0
        %v1018 = vlaneseq
        %v1019 = vshrl.u32 %v1018, 7
        %v1020 = vadd.s32 %v1019, 8
        %v1021 = vlaneseq
        %v1022 = vand.u32 %v1021, 127
        %vm1023 = vcmp.ge.s32.totalorder %v1022, 0
        %vm1024 = vcmp.lt.s32.totalorder %v1022, 8
        %vm1025 = vmand %vm1023, %vm1024
        %vm1026 = vcmp.le.s32.totalorder %v1019, 14
        %vm1027 = vcmp.le.s32.totalorder %v1020, 14
        %vm1028 = vmand %vm1025, %vm1026
        %vm1029 = vmand %vm1025, %vm1027
        %vm1030 = vcmp.ge.s32.totalorder %v1022, 8
        %vm1031 = vcmp.lt.s32.totalorder %v1022, 16
        %vm1032 = vmand %vm1030, %vm1031
        %vm1033 = vcmp.le.s32.totalorder %v1019, 13
        %vm1034 = vcmp.le.s32.totalorder %v1020, 13
        %vm1035 = vmand %vm1032, %vm1033
        %vm1036 = vmand %vm1032, %vm1034
        %vm1037 = vmor %vm1028, %vm1035
        %vm1038 = vmor %vm1029, %vm1036
        %vm1039 = vcmp.ge.s32.totalorder %v1022, 16
        %vm1040 = vcmp.lt.s32.totalorder %v1022, 24
        %vm1041 = vmand %vm1039, %vm1040
        %vm1042 = vcmp.le.s32.totalorder %v1019, 12
        %vm1043 = vcmp.le.s32.totalorder %v1020, 12
        %vm1044 = vmand %vm1041, %vm1042
        %vm1045 = vmand %vm1041, %vm1043
        %vm1046 = vmor %vm1037, %vm1044
        %vm1047 = vmor %vm1038, %vm1045
        %v1048 = vsel %vm1046, 1, 0
        %v1049 = vsel %vm1047, 1, 0
        %v1050 = vcombine.high %v1048, %v1048
        %v1052 = vunpack.c.l.s4 1966171168
        %v1053 = vunpack.c.0.s8 %v1052
        %v1054 = vlaneseq
        %v1055 = vshrl.u32 %v1054, 7
        %v1056 = vsub.s32 %v1053, %v1055
        %v1057 = vrot.slane %v1048, %v1056
        %v1059 = vunpack.c.l.s4 1966171168
        %v1060 = vunpack.c.0.s8 %v1059
        %v1061 = vlaneseq
        %v1062 = vshrl.u32 %v1061, 7
        %v1063 = vsub.s32 %v1060, %v1062
        %v1064 = vrot.slane %v1050, %v1063
        %v1065 = vcombine.high %v1057, %v1057
        %v1066 = vcombine.high %v1064, %v1064
        %v1068 = vunpack.c.l.s4 1966171168
        %v1069 = vunpack.c.0.s8 %v1068
        %v1070 = vlaneseq
        %v1071 = vshrl.u32 %v1070, 7
        %v1072 = vsub.s32 %v1069, %v1071
        %v1073 = vrot.slane %v1057, %v1072
        %v1075 = vunpack.c.l.s4 1966171168
        %v1076 = vunpack.c.0.s8 %v1075
        %v1077 = vlaneseq
        %v1078 = vshrl.u32 %v1077, 7
        %v1079 = vsub.s32 %v1076, %v1078
        %v1080 = vrot.slane %v1064, %v1079
        %v1082 = vunpack.c.l.s4 1966171168
        %v1083 = vunpack.c.0.s8 %v1082
        %v1084 = vlaneseq
        %v1085 = vshrl.u32 %v1084, 7
        %v1086 = vsub.s32 %v1083, %v1085
        %v1087 = vrot.slane %v1065, %v1086
        %v1089 = vunpack.c.l.s4 1966171168
        %v1090 = vunpack.c.0.s8 %v1089
        %v1091 = vlaneseq
        %v1092 = vshrl.u32 %v1091, 7
        %v1093 = vsub.s32 %v1090, %v1092
        %v1094 = vrot.slane %v1066, %v1093
        %v1095 = vcombine.high %v1073, %v1073
        %v1096 = vcombine.high %v1080, %v1080
        %v1097 = vcombine.high %v1087, %v1087
        %v1098 = vcombine.high %v1094, %v1094
        %v1099 = vcombine.high %v1049, %v1049
        %v1101 = vunpack.c.l.s4 1966171168
        %v1102 = vunpack.c.0.s8 %v1101
        %v1103 = vlaneseq
        %v1104 = vshrl.u32 %v1103, 7
        %v1105 = vsub.s32 %v1102, %v1104
        %v1106 = vrot.slane %v1049, %v1105
        %v1108 = vunpack.c.l.s4 1966171168
        %v1109 = vunpack.c.0.s8 %v1108
        %v1110 = vlaneseq
        %v1111 = vshrl.u32 %v1110, 7
        %v1112 = vsub.s32 %v1109, %v1111
        %v1113 = vrot.slane %v1099, %v1112
        %v1114 = vcombine.high %v1106, %v1106
        %v1115 = vcombine.high %v1113, %v1113
        %v1117 = vunpack.c.l.s4 1966171168
        %v1118 = vunpack.c.0.s8 %v1117
        %v1119 = vlaneseq
        %v1120 = vshrl.u32 %v1119, 7
        %v1121 = vsub.s32 %v1118, %v1120
        %v1122 = vrot.slane %v1106, %v1121
        %v1124 = vunpack.c.l.s4 1966171168
        %v1125 = vunpack.c.0.s8 %v1124
        %v1126 = vlaneseq
        %v1127 = vshrl.u32 %v1126, 7
        %v1128 = vsub.s32 %v1125, %v1127
        %v1129 = vrot.slane %v1113, %v1128
        %v1131 = vunpack.c.l.s4 1966171168
        %v1132 = vunpack.c.0.s8 %v1131
        %v1133 = vlaneseq
        %v1134 = vshrl.u32 %v1133, 7
        %v1135 = vsub.s32 %v1132, %v1134
        %v1136 = vrot.slane %v1114, %v1135
        %v1138 = vunpack.c.l.s4 1966171168
        %v1139 = vunpack.c.0.s8 %v1138
        %v1140 = vlaneseq
        %v1141 = vshrl.u32 %v1140, 7
        %v1142 = vsub.s32 %v1139, %v1141
        %v1143 = vrot.slane %v1115, %v1142
        %v1144 = vcombine.high %v1122, %v1122
        %v1145 = vcombine.high %v1129, %v1129
        %v1146 = vcombine.high %v1136, %v1136
        %v1147 = vcombine.high %v1143, %v1143
        %vm1148 = vcmp.ne.s32.totalorder %v1073, 0
        %vm1149 = vcmp.ne.s32.totalorder %v1087, 0
        %vm1150 = vcmp.ne.s32.totalorder %v1095, 0
        %vm1151 = vcmp.ne.s32.totalorder %v1097, 0
        %vm1152 = vcmp.ne.s32.totalorder %v1080, 0
        %vm1153 = vcmp.ne.s32.totalorder %v1094, 0
        %vm1154 = vcmp.ne.s32.totalorder %v1096, 0
        %vm1155 = vcmp.ne.s32.totalorder %v1098, 0
        %vm1156 = vcmp.ne.s32.totalorder %v1122, 0
        %vm1157 = vcmp.ne.s32.totalorder %v1136, 0
        %vm1158 = vcmp.ne.s32.totalorder %v1144, 0
        %vm1159 = vcmp.ne.s32.totalorder %v1146, 0
        %vm1160 = vcmp.ne.s32.totalorder %v1129, 0
        %vm1161 = vcmp.ne.s32.totalorder %v1143, 0
        %vm1162 = vcmp.ne.s32.totalorder %v1145, 0
        %vm1163 = vcmp.ne.s32.totalorder %v1147, 0
        %v1164 = vsel %vm1148, 1, 0
        %v1165 = vsel %vm1149, 1, 0
        %v1166 = vsel %vm1150, 1, 0
        %v1167 = vsel %vm1151, 1, 0
        %v1168 = vsel %vm1152, 1, 0
        %v1169 = vsel %vm1153, 1, 0
        %v1170 = vsel %vm1154, 1, 0
        %v1171 = vsel %vm1155, 1, 0
        %v1172 = vsel %vm1156, 1, 0
        %v1173 = vsel %vm1157, 1, 0
        %v1174 = vsel %vm1158, 1, 0
        %v1175 = vsel %vm1159, 1, 0
        %v1176 = vsel %vm1160, 1, 0
        %v1177 = vsel %vm1161, 1, 0
        %v1178 = vsel %vm1162, 1, 0
        %v1179 = vsel %vm1163, 1, 0
        %v1180 = vlaneseq
        %v1181 = vshrl.u32 %v1180, 7
        %v1182 = vsub.s32 0, %v1181
        %v1183 = vrot.slane %v1164, %v1182
        %v1184 = vlaneseq
        %v1185 = vshrl.u32 %v1184, 7
        %v1186 = vsub.s32 0, %v1185
        %v1187 = vrot.slane %v1165, %v1186
        %v1188 = vlaneseq
        %v1189 = vshrl.u32 %v1188, 7
        %v1190 = vsub.s32 0, %v1189
        %v1191 = vrot.slane %v1166, %v1190
        %v1192 = vlaneseq
        %v1193 = vshrl.u32 %v1192, 7
        %v1194 = vsub.s32 0, %v1193
        %v1195 = vrot.slane %v1167, %v1194
        %v1196 = vlaneseq
        %v1197 = vshrl.u32 %v1196, 7
        %v1198 = vsub.s32 0, %v1197
        %v1199 = vrot.slane %v1168, %v1198
        %v1200 = vlaneseq
        %v1201 = vshrl.u32 %v1200, 7
        %v1202 = vsub.s32 0, %v1201
        %v1203 = vrot.slane %v1169, %v1202
        %v1204 = vlaneseq
        %v1205 = vshrl.u32 %v1204, 7
        %v1206 = vsub.s32 0, %v1205
        %v1207 = vrot.slane %v1170, %v1206
        %v1208 = vlaneseq
        %v1209 = vshrl.u32 %v1208, 7
        %v1210 = vsub.s32 0, %v1209
        %v1211 = vrot.slane %v1171, %v1210
        %v1212 = vlaneseq
        %v1213 = vshrl.u32 %v1212, 7
        %v1214 = vsub.s32 0, %v1213
        %v1215 = vrot.slane %v1172, %v1214
        %v1216 = vlaneseq
        %v1217 = vshrl.u32 %v1216, 7
        %v1218 = vsub.s32 0, %v1217
        %v1219 = vrot.slane %v1173, %v1218
        %v1220 = vlaneseq
        %v1221 = vshrl.u32 %v1220, 7
        %v1222 = vsub.s32 0, %v1221
        %v1223 = vrot.slane %v1174, %v1222
        %v1224 = vlaneseq
        %v1225 = vshrl.u32 %v1224, 7
        %v1226 = vsub.s32 0, %v1225
        %v1227 = vrot.slane %v1175, %v1226
        %v1228 = vlaneseq
        %v1229 = vshrl.u32 %v1228, 7
        %v1230 = vsub.s32 0, %v1229
        %v1231 = vrot.slane %v1176, %v1230
        %v1232 = vlaneseq
        %v1233 = vshrl.u32 %v1232, 7
        %v1234 = vsub.s32 0, %v1233
        %v1235 = vrot.slane %v1177, %v1234
        %v1236 = vlaneseq
        %v1237 = vshrl.u32 %v1236, 7
        %v1238 = vsub.s32 0, %v1237
        %v1239 = vrot.slane %v1178, %v1238
        %v1240 = vlaneseq
        %v1241 = vshrl.u32 %v1240, 7
        %v1242 = vsub.s32 0, %v1241
        %v1243 = vrot.slane %v1179, %v1242
        %vm1244 = vcmp.eq.s32.totalorder %v1183, 1
        %vm1245 = vcmp.eq.s32.totalorder %v1187, 1
        %vm1246 = vcmp.eq.s32.totalorder %v1191, 1
        %vm1247 = vcmp.eq.s32.totalorder %v1195, 1
        %vm1248 = vcmp.eq.s32.totalorder %v1199, 1
        %vm1249 = vcmp.eq.s32.totalorder %v1203, 1
        %vm1250 = vcmp.eq.s32.totalorder %v1207, 1
        %vm1251 = vcmp.eq.s32.totalorder %v1211, 1
        %vm1252 = vcmp.eq.s32.totalorder %v1215, 1
        %vm1253 = vcmp.eq.s32.totalorder %v1219, 1
        %vm1254 = vcmp.eq.s32.totalorder %v1223, 1
        %vm1255 = vcmp.eq.s32.totalorder %v1227, 1
        %vm1256 = vcmp.eq.s32.totalorder %v1231, 1
        %vm1257 = vcmp.eq.s32.totalorder %v1235, 1
        %vm1258 = vcmp.eq.s32.totalorder %v1239, 1
        %vm1259 = vcmp.eq.s32.totalorder %v1243, 1
        %v1260 = vsel %vm1244, %v1002, 0.0
        %v1261 = vsel %vm1245, %v1003, 0.0
        %v1262 = vsel %vm1246, %v1004, 0.0
        %v1263 = vsel %vm1247, %v1005, 0.0
        %v1264 = vsel %vm1248, %v1006, 0.0
        %v1265 = vsel %vm1249, %v1007, 0.0
        %v1266 = vsel %vm1250, %v1008, 0.0
        %v1267 = vsel %vm1251, %v1009, 0.0
        %v1268 = vsel %vm1252, %v1010, 0.0
        %v1269 = vsel %vm1253, %v1011, 0.0
        %v1270 = vsel %vm1254, %v1012, 0.0
        %v1271 = vsel %vm1255, %v1013, 0.0
        %v1272 = vsel %vm1256, %v1014, 0.0
        %v1273 = vsel %vm1257, %v1015, 0.0
        %v1274 = vsel %vm1258, %v1016, 0.0
        %v1275 = vsel %vm1259, %v1017, 0.0
        %v1276 = vmax.f32 %v1260, %v1264
        %v1277 = vmax.f32 %v1261, %v1265
        %v1278 = vmax.f32 %v1262, %v1266
        %v1279 = vmax.f32 %v1263, %v1267
        %v1280 = vmax.f32 %v1276, %v1268
        %v1281 = vmax.f32 %v1277, %v1269
        %v1282 = vmax.f32 %v1278, %v1270
        %v1283 = vmax.f32 %v1279, %v1271
        %v1284 = vmax.f32 %v1280, %v1272
        %v1285 = vmax.f32 %v1281, %v1273
        %v1286 = vmax.f32 %v1282, %v1274
        %v1287 = vmax.f32 %v1283, %v1275
        %v1288 = vmax.f32 %v1284, %v1285
        %v1289 = vmax.f32 %v1286, %v1287
        %v1290 = vmax.f32 %v1288, %v1289
        %v1291 = vld [vmem:[#allocation7] sm:$0xff]
        %v1292 = vld [vmem:[#allocation7 + $0x8] sm:$0xff]
        %v1293 = vld [vmem:[#allocation7 + $0x10] sm:$0xff]
        %v1294 = vld [vmem:[#allocation7 + $0x18] sm:$0xff]
        %v1295 = vld [vmem:[#allocation7 + $0x20] sm:$0xff]
        %v1296 = vld [vmem:[#allocation7 + $0x28] sm:$0xff]
        %v1297 = vld [vmem:[#allocation7 + $0x30] sm:$0xff]
        %v1298 = vld [vmem:[#allocation7 + $0x38] sm:$0xff]
        %v1299 = vld [vmem:[#allocation7 + $0x40] sm:$0xff]
        %v1300 = vld [vmem:[#allocation7 + $0x48] sm:$0xff]
        %v1301 = vld [vmem:[#allocation7 + $0x50] sm:$0xff]
        %v1302 = vld [vmem:[#allocation7 + $0x58] sm:$0xff]
        %v1303 = vld [vmem:[#allocation7 + $0x60] sm:$0xff]
        %v1304 = vld [vmem:[#allocation7 + $0x68] sm:$0xff]
        %v1305 = vld [vmem:[#allocation7 + $0x70] sm:$0xff]
        %v1306 = vld [vmem:[#allocation7 + $0x78] sm:$0xff]
        %v1307 = vld [vmem:[%s4] sm:$0x1]
        %v1309 = vlaneseq
        %v1310 = vshrl.u32 %v1309, 7
        %v1311 = vsub.s32 0, %v1310
        %v1312 = vrot.slane %v1307, %v1311
        %1314 = vmatprep.subr.mxu0 0.0
        %1315 = vmatpush1.msra.mxu0 %v1291
        %1316 = vmatprep.subr.mxu0 0.0
        %1317 = vmatpush1.msra.mxu0 %v1292
        %1318 = vmatprep.subr.mxu0 0.0
        %1319 = vmatpush1.msra.mxu0 %v1293
        %1320 = vmatprep.subr.mxu0 0.0
        %1321 = vmatpush1.msra.mxu0 %v1294
        %1322 = vmatprep.subr.mxu0 0.0
        %1323 = vmatpush1.msra.mxu0 %v1295
        %1324 = vmatprep.subr.mxu0 0.0
        %1325 = vmatpush1.msra.mxu0 %v1296
        %1326 = vmatprep.subr.mxu0 0.0
        %1327 = vmatpush1.msra.mxu0 %v1297
        %1328 = vmatprep.subr.mxu0 0.0
        %1329 = vmatpush1.msra.mxu0 %v1298
        %1330 = vmatprep.subr.mxu0 0.0
        %1331 = vmatpush1.msra.mxu0 %v1299
        %1332 = vmatprep.subr.mxu0 0.0
        %1333 = vmatpush1.msra.mxu0 %v1300
        %1334 = vmatprep.subr.mxu0 0.0
        %1335 = vmatpush1.msra.mxu0 %v1301
        %1336 = vmatprep.subr.mxu0 0.0
        %1337 = vmatpush1.msra.mxu0 %v1302
        %1338 = vmatprep.subr.mxu0 0.0
        %1339 = vmatpush1.msra.mxu0 %v1303
        %1340 = vmatprep.subr.mxu0 0.0
        %1341 = vmatpush1.msra.mxu0 %v1304
        %1342 = vmatprep.subr.mxu0 0.0
        %1343 = vmatpush1.msra.mxu0 %v1305
        %1344 = vmatprep.subr.mxu0 0.0
        %1345 = vmatpush1.msra.mxu0 %v1306
        %1346 = vmatprep.subr.mxu0 0.0
        %1347 = vmatpush1.msra.mxu0 0.0
        %1348 = vmatprep.subr.mxu0 0.0
        %1349 = vmatpush1.msra.mxu0 0.0
        %1350 = vmatprep.subr.mxu0 0.0
        %1351 = vmatpush1.msra.mxu0 0.0
        %1352 = vmatprep.subr.mxu0 0.0
        %1353 = vmatpush1.msra.mxu0 0.0
        %1354 = vmatprep.subr.mxu0 0.0
        %1355 = vmatpush1.msra.mxu0 0.0
        %1356 = vmatprep.subr.mxu0 0.0
        %1357 = vmatpush1.msra.mxu0 0.0
        %1358 = vmatprep.subr.mxu0 0.0
        %1359 = vmatpush1.msra.mxu0 0.0
        %1360 = vmatprep.subr.mxu0 0.0
        %1361 = vmatpush1.msra.mxu0 0.0
        %1362 = vmatprep.subr.mxu0 0.0
        %1363 = vmatpush1.msra.mxu0 0.0
        %1364 = vmatprep.subr.mxu0 0.0
        %1365 = vmatpush1.msra.mxu0 0.0
        %1366 = vmatprep.subr.mxu0 0.0
        %1367 = vmatpush1.msra.mxu0 0.0
        %1368 = vmatprep.subr.mxu0 0.0
        %1369 = vmatpush1.msra.mxu0 0.0
        %1370 = vmatprep.subr.mxu0 0.0
        %1371 = vmatpush1.msra.mxu0 0.0
        %1372 = vmatprep.subr.mxu0 0.0
        %1373 = vmatpush1.msra.mxu0 0.0
        %1374 = vmatprep.subr.mxu0 0.0
        %1375 = vmatpush1.msra.mxu0 0.0
        %1376 = vmatprep.subr.mxu0 0.0
        %1377 = vmatpush1.msra.mxu0 0.0
        %1378 = vmatprep.mubr.f32.mxu0 0.0
        %1379 = vmatmul.mubr.f32.gmra.mrb[0].mxu0 %v1290
        %v1380 = vpop.f32.mrb[0].mxu0
        %v1381 = vadd.f32 %v1312, %v1380
        %v1382 = vpop.f32.mrb[0].mxu0
        %1383 = vdwg.mxu0
        %1384 = vst [vmem:[%s270] sm:$0xff] %v1381
        %s1385 = sand.u32 %s141, 1
        %s1386 = scalar_lea.sflag [#allocation4], %s1385
        %s1387 = sand.u32 %s141, 1
        %s1388 = smul.addr %s1387, 8
        %s1389 = scalar_lea.vmem [#allocation8], %s1388
        // Predicated region
        $region53: #{tpu_custom_call.1} parent=39 // pred_check
          %p1390 = pneg %p151
        $region54: #{tpu_custom_call.1} parent=39 // pred_check_branch
          %1392 = sbr.rel (%p1390) target = $region56
        $region55: #{tpu_custom_call.1} parent=39 // pred_region
          %s1394 = ssub.s32 128, 128
          %1395 = vsyncadd %s1386, %s1394
          %s1396 = smul.addr %s23, 128
          %s1397 = scalar_lea.hbm %s5, %s1396
          %s1399 = sshll.u32 %s1389, 4
          %s1400 = int_to_ptr.vmem [resolvable:$true] %s1399
          %1402 = dma.vmem_to_hbm [thread:$0]  %s1400, 128, %s1397, %s1386
        $region56: #{tpu_custom_call.1} parent=39 // pred_fallthru
          _
      $region40: #{tpu_custom_call.1} parent=5 // pred_fallthru
        _
      %p1403 = scmp.le.s32.totalorder 2, %s18
      // Predicated region
      $region57: #{tpu_custom_call.1} parent=5 // pred_check
        %p1404 = pneg %p1403
      $region58: #{tpu_custom_call.1} parent=5 // pred_check_branch
        %1406 = sbr.rel (%p1404) target = $region60
      $region59: #{tpu_custom_call.1} parent=5 // pred_region
        %s1407 = ssub.s32 %s18, 2
        // Predicated region
        $region61: #{tpu_custom_call.1} parent=59 // pred_check
          %p1408 = pneg %p157
        $region62: #{tpu_custom_call.1} parent=59 // pred_check_branch
          %1410 = sbr.rel (%p1408) target = $region64
        $region63: #{tpu_custom_call.1} parent=59 // pred_region
          %s1411 = sand.u32 %s142, 1
          %s1412 = scalar_lea.sflag [#allocation4], %s1411
          %s1413 = sand.u32 %s142, 1
          %s1414 = smul.addr %s1413, 8
          %s1415 = scalar_lea.vmem [#allocation8], %s1414
          %1416 = dma.done %s1412, 128
        $region64: #{tpu_custom_call.1} parent=59 // pred_fallthru
          _
      $region60: #{tpu_custom_call.1} parent=5 // pred_fallthru
        _
    $region6: #{tpu_custom_call.1} parent=1 // loop_footer
      %s22 = sadd.s32 1, %s18
    $region7: #{tpu_custom_call.1} parent=1 // loop_footer_branch
      %17 = sbr.rel target = $region3
    $region8: #{tpu_custom_call.1} parent=1 // loop_exit
      _
    %1417 = vsyncpa [#allocation3], 1
    %s1418 = scalar_lea.sflag [#allocation3], 1
    %1419 = vsyncpa %s1418, 1
    %1420 = vsyncpa [#allocation6], 1
    %1421 = vsyncpa [#allocation4], 1
    %s1422 = scalar_lea.sflag [#allocation4], 1
    %1423 = vsyncpa %s1422, 1

</llo_original>
